<compile_context>
chip_gen: v7x
topology: tpu7x:2x2x1
jax: 0.10.0
libtpu: 0.0.40
codegen_flags: <defaults>
</compile_context>

<pallas_src>
import functools

import jax
import jax.numpy as jnp
from jax.experimental import pallas as pl
from jax.experimental.pallas import tpu as pltpu

BN_EPS = 1e-5
LANE = 128
SUBLANE = 8


def _round_up(n, m):
    return ((n + m - 1) // m) * m


def _pad2(a, rows, cols):
    return jnp.pad(a, ((0, rows - a.shape[0]), (0, cols - a.shape[1])))


# ---------------------------------------------------------------------------
# Fused Pallas kernel: one grid step == full forward of one view
# ---------------------------------------------------------------------------
def _simsiam_fused_kernel(
    x_ref,
    bk_w_ref, bk_b_ref,
    pj1_w_ref, pj1_b_ref, pj1_g_ref, pj1_be_ref,
    pj2_w_ref, pj2_b_ref, pj2_g_ref, pj2_be_ref,
    pj3_w_ref, pj3_b_ref, pj3_g_ref, pj3_be_ref,
    pd1_w_ref, pd1_b_ref, pd1_g_ref, pd1_be_ref,
    pd2_w_ref, pd2_b_ref,
    z_ref, p_ref,
    *, batch: int,
):
    x = x_ref[...]                                   # (B_pad, C*H*W) f32
    b_pad = x.shape[0]

    # Rows >= batch are zero padding; mask them out of the BatchNorm stats so
    # padding never changes the result.
    row_mask = (jax.lax.broadcasted_iota(jnp.int32, (b_pad, 1), 0)
                < batch).astype(jnp.float32)
    inv_b = 1.0 / float(batch)

    def linear(h, w_ref, b_ref):
        y = jnp.dot(h, w_ref[...], preferred_element_type=jnp.float32)
        return y + b_ref[...]

    def bn(y, g_ref, be_ref):
        # PyTorch train-mode BatchNorm1d: biased batch variance, eps, affine.
        mean = jnp.sum(y * row_mask, axis=0, keepdims=True) * inv_b
        d = y - mean
        var = jnp.sum(d * d * row_mask, axis=0, keepdims=True) * inv_b
        return d * jax.lax.rsqrt(var + BN_EPS) * g_ref[...] + be_ref[...]

    def relu(t):
        return jnp.maximum(t, 0.0)

    # ---- encoder: synthetic backbone (mean-pool folded into the weight) ----
    h = relu(linear(x, bk_w_ref, bk_b_ref))
    # ---- projector ----
    h = relu(bn(linear(h, pj1_w_ref, pj1_b_ref), pj1_g_ref, pj1_be_ref))
    h = relu(bn(linear(h, pj2_w_ref, pj2_b_ref), pj2_g_ref, pj2_be_ref))
    z = bn(linear(h, pj3_w_ref, pj3_b_ref), pj3_g_ref, pj3_be_ref)
    # ---- predictor ----
    h = relu(bn(linear(z, pd1_w_ref, pd1_b_ref), pd1_g_ref, pd1_be_ref))
    p = linear(h, pd2_w_ref, pd2_b_ref)

    z_ref[...] = z.astype(z_ref.dtype)
    p_ref[...] = p.astype(p_ref.dtype)


# ---------------------------------------------------------------------------
# Parameter construction (deterministic, PyTorch-Linear-style uniform init)
# ---------------------------------------------------------------------------
def _uniform_linear(key, din, dout):
    kw, kb = jax.random.split(key)
    bound = 1.0 / float(din) ** 0.5
    w = jax.random.uniform(kw, (din, dout), jnp.float32, -bound, bound)
    b = jax.random.uniform(kb, (1, dout), jnp.float32, -bound, bound)
    return w, b


class SimSiamPallas:
    """SimSiam forward pass as a single fused Pallas TPU kernel.

    encoder = synthetic backbone (GAP + Linear + ReLU) -> Projector (3 layers)
    predictor = Predictor (2 layers)
    """

    def __init__(self, key, in_channels, spatial_size, feature_size=32,
                 projection_dim=32, proj_hidden_dim=64, pred_hidden_dim=64):
        F, PH, P, DH = feature_size, proj_hidden_dim, projection_dim, pred_hidden_dim
        Fp, PHp, Pp, DHp = (_round_up(d, LANE) for d in (F, PH, P, DH))
        self.P, self.P_pad = P, Pp

        keys = jax.random.split(key, 6)
        bk_w, bk_b = _uniform_linear(keys[0], in_channels, F)
        pj1_w, pj1_b = _uniform_linear(keys[1], F, PH)
        pj2_w, pj2_b = _uniform_linear(keys[2], PH, PH)
        pj3_w, pj3_b = _uniform_linear(keys[3], PH, P)
        pd1_w, pd1_b = _uniform_linear(keys[4], P, DH)
        pd2_w, pd2_b = _uniform_linear(keys[5], DH, P)

        ones = lambda d: jnp.ones((1, d), jnp.float32)
        zeros = lambda d: jnp.zeros((1, d), jnp.float32)

        # Unpadded copies for the pure-JAX reference check.
        self._ref = dict(
            bk_w=bk_w, bk_b=bk_b,
            pj1_w=pj1_w, pj1_b=pj1_b, pj1_g=ones(PH), pj1_be=zeros(PH),
            pj2_w=pj2_w, pj2_b=pj2_b, pj2_g=ones(PH), pj2_be=zeros(PH),
            pj3_w=pj3_w, pj3_b=pj3_b, pj3_g=ones(P), pj3_be=zeros(P),
            pd1_w=pd1_w, pd1_b=pd1_b, pd1_g=ones(DH), pd1_be=zeros(DH),
            pd2_w=pd2_w, pd2_b=pd2_b,
        )

        # Fold the spatial mean-pool into the backbone weight:
        # W_fold[c*HW + s, f] = bk_w[c, f] / HW  (rows repeated per spatial pos).
        hw = spatial_size
        bk_w_fold = jnp.repeat(_pad2(bk_w, in_channels, Fp), hw, axis=0) / float(hw)

        # Zero-pad every weight / bias / gamma / beta to lane-dense 128 columns
        # (and 128-row contraction dims) once, at init.
        self._params = [
            bk_w_fold, _pad2(bk_b, 1, Fp),
            _pad2(pj1_w, Fp, PHp), _pad2(pj1_b, 1, PHp), _pad2(ones(PH), 1, PHp), zeros(PHp),
            _pad2(pj2_w, PHp, PHp), _pad2(pj2_b, 1, PHp), _pad2(ones(PH), 1, PHp), zeros(PHp),
            _pad2(pj3_w, PHp, Pp), _pad2(pj3_b, 1, Pp), _pad2(ones(P), 1, Pp), zeros(Pp),
            _pad2(pd1_w, Pp, DHp), _pad2(pd1_b, 1, DHp), _pad2(ones(DH), 1, DHp), zeros(DHp),
            _pad2(pd2_w, DHp, Pp), _pad2(pd2_b, 1, Pp),
        ]

    # -------------------------------------------------------------------
    def forward(self, x):
        x1, x2 = x
        B, C, H, W = x1.shape
        b_pad = _round_up(B, SUBLANE)
        chw = C * H * W

        def prep(xv):
            return jnp.pad(xv.reshape(B, chw), ((0, b_pad - B), (0, 0)))

        xs = jnp.stack([prep(x1), prep(x2)], axis=0)          # (2, b_pad, chw)

        kernel = functools.partial(_simsiam_fused_kernel, batch=B)

        def resident(arr):
            # Same block for every grid step -> weights stay VMEM-resident.
            return pl.BlockSpec(arr.shape, lambda v: (0,) * arr.ndim)

        in_specs = [pl.BlockSpec((None, b_pad, chw), lambda v: (v, 0, 0))]
        in_specs += [resident(p) for p in self._params]

        out_specs = (
            pl.BlockSpec((None, b_pad, self.P_pad), lambda v: (v, 0, 0)),
            pl.BlockSpec((None, b_pad, self.P_pad), lambda v: (v, 0, 0)),
        )

        z, p = pl.pallas_call(
            kernel,
            out_shape=(
                jax.ShapeDtypeStruct((2, b_pad, self.P_pad), jnp.float32),
                jax.ShapeDtypeStruct((2, b_pad, self.P_pad), jnp.float32),
            ),
            grid=(2,),                                        # one step per view
            in_specs=in_specs,
            out_specs=out_specs,
            compiler_params=pltpu.CompilerParams(
                dimension_semantics=("parallel",)),
        )(xs, *self._params)

        z1, z2 = z[0, :B, :self.P], z[1, :B, :self.P]
        p1, p2 = p[0, :B, :self.P], p[1, :B, :self.P]
        return z1, z2, p1, p2

    # -------------------------------------------------------------------
    def reference_forward(self, xv):
        """Pure-JAX reference (unpadded params, full-precision matmuls)."""
        prm = self._ref
        hdot = functools.partial(jnp.dot, precision=jax.lax.Precision.HIGHEST)
        B, C, H, W = xv.shape
        pooled = xv.reshape(B, C, H * W).mean(axis=2)
        feat = jnp.maximum(hdot(pooled, prm["bk_w"]) + prm["bk_b"], 0.0)

        def blk(h, w, b, g=None, be=None, use_bn=True, use_relu=True):
            y = hdot(h, w) + b
            if use_bn:
                m = y.mean(axis=0, keepdims=True)
                v = jnp.mean((y - m) ** 2, axis=0, keepdims=True)
                y = (y - m) / jnp.sqrt(v + BN_EPS) * g + be
            if use_relu:
                y = jnp.maximum(y, 0.0)
            return y

        h = blk(feat, prm["pj1_w"], prm["pj1_b"], prm["pj1_g"], prm["pj1_be"])
        h = blk(h, prm["pj2_w"], prm["pj2_b"], prm["pj2_g"], prm["pj2_be"])
        z = blk(h, prm["pj3_w"], prm["pj3_b"], prm["pj3_g"], prm["pj3_be"],
                use_relu=False)
        h = blk(z, prm["pd1_w"], prm["pd1_b"], prm["pd1_g"], prm["pd1_be"])
        p = blk(h, prm["pd2_w"], prm["pd2_b"], use_bn=False, use_relu=False)
        return z, p


# ---------------------------------------------------------------------------
if __name__ == "__main__":
    key = jax.random.PRNGKey(0)
    k_params, k_x1, k_x2 = jax.random.split(key, 3)

    B, C, H, W = 2, 4, 16, 16  # small NCHW views
    x1 = jax.random.normal(k_x1, (B, C, H, W), jnp.float32)
    x2 = jax.random.normal(k_x2, (B, C, H, W), jnp.float32)

    model = SimSiamPallas(k_params, in_channels=C, spatial_size=H * W,
                          feature_size=32, projection_dim=32,
                          proj_hidden_dim=64, pred_hidden_dim=64)

    z1, z2, p1, p2 = model.forward((x1, x2))
    jax.block_until_ready((z1, z2, p1, p2))

    assert z1.shape == (B, 32) and z2.shape == (B, 32)
    assert p1.shape == (B, 32) and p2.shape == (B, 32)

    # Correctness check vs. pure-JAX reference (loose tolerance accounts for
    # MXU f32 multi-pass vs. XLA matmul rounding differences).
    z1r, p1r = model.reference_forward(x1)
    z2r, p2r = model.reference_forward(x2)
    for got, ref in ((z1, z1r), (z2, z2r), (p1, p1r), (p2, p2r)):
        err = float(jnp.max(jnp.abs(got - ref)))
        assert err < 2e-2, f"mismatch vs reference: max abs err = {err}"

    print("KERNEL_OK")
</pallas_src>

<mosaic_0001>
module attributes {stable_mosaic.version = 11 : i64} {
  func.func @_simsiam_fused_kernel(%arg0: i32, %arg1: memref<1x8x1024xf32, #tpu.memory_space<vmem>>, %arg2: memref<1024x128xf32, #tpu.memory_space<vmem>>, %arg3: memref<1x128xf32, #tpu.memory_space<vmem>>, %arg4: memref<128x128xf32, #tpu.memory_space<vmem>>, %arg5: memref<1x128xf32, #tpu.memory_space<vmem>>, %arg6: memref<1x128xf32, #tpu.memory_space<vmem>>, %arg7: memref<1x128xf32, #tpu.memory_space<vmem>>, %arg8: memref<128x128xf32, #tpu.memory_space<vmem>>, %arg9: memref<1x128xf32, #tpu.memory_space<vmem>>, %arg10: memref<1x128xf32, #tpu.memory_space<vmem>>, %arg11: memref<1x128xf32, #tpu.memory_space<vmem>>, %arg12: memref<128x128xf32, #tpu.memory_space<vmem>>, %arg13: memref<1x128xf32, #tpu.memory_space<vmem>>, %arg14: memref<1x128xf32, #tpu.memory_space<vmem>>, %arg15: memref<1x128xf32, #tpu.memory_space<vmem>>, %arg16: memref<128x128xf32, #tpu.memory_space<vmem>>, %arg17: memref<1x128xf32, #tpu.memory_space<vmem>>, %arg18: memref<1x128xf32, #tpu.memory_space<vmem>>, %arg19: memref<1x128xf32, #tpu.memory_space<vmem>>, %arg20: memref<128x128xf32, #tpu.memory_space<vmem>>, %arg21: memref<1x128xf32, #tpu.memory_space<vmem>>, %arg22: memref<1x8x128xf32, #tpu.memory_space<vmem>>, %arg23: memref<1x8x128xf32, #tpu.memory_space<vmem>>) attributes {dimension_semantics = [#tpu.dimension_semantics<parallel>], iteration_bounds = array<i64: 2>, scalar_prefetch = 0 : i64, scratch_operands = 0 : i64, tpu.core_type = #tpu.core_type<tc>, window_params = [{transform_indices = @transform_0, window_bounds = array<i64: 1, 8, 1024>}, {pipeline_mode = #tpu.pipeline_mode<synchronous>, transform_indices = @transform_1, window_bounds = array<i64: 1024, 128>}, {pipeline_mode = #tpu.pipeline_mode<synchronous>, transform_indices = @transform_2, window_bounds = array<i64: 1, 128>}, {pipeline_mode = #tpu.pipeline_mode<synchronous>, transform_indices = @transform_3, window_bounds = array<i64: 128, 128>}, {pipeline_mode = #tpu.pipeline_mode<synchronous>, transform_indices = @transform_4, window_bounds = array<i64: 1, 128>}, {pipeline_mode = #tpu.pipeline_mode<synchronous>, transform_indices = @transform_5, window_bounds = array<i64: 1, 128>}, {pipeline_mode = #tpu.pipeline_mode<synchronous>, transform_indices = @transform_6, window_bounds = array<i64: 1, 128>}, {pipeline_mode = #tpu.pipeline_mode<synchronous>, transform_indices = @transform_7, window_bounds = array<i64: 128, 128>}, {pipeline_mode = #tpu.pipeline_mode<synchronous>, transform_indices = @transform_8, window_bounds = array<i64: 1, 128>}, {pipeline_mode = #tpu.pipeline_mode<synchronous>, transform_indices = @transform_9, window_bounds = array<i64: 1, 128>}, {pipeline_mode = #tpu.pipeline_mode<synchronous>, transform_indices = @transform_10, window_bounds = array<i64: 1, 128>}, {pipeline_mode = #tpu.pipeline_mode<synchronous>, transform_indices = @transform_11, window_bounds = array<i64: 128, 128>}, {pipeline_mode = #tpu.pipeline_mode<synchronous>, transform_indices = @transform_12, window_bounds = array<i64: 1, 128>}, {pipeline_mode = #tpu.pipeline_mode<synchronous>, transform_indices = @transform_13, window_bounds = array<i64: 1, 128>}, {pipeline_mode = #tpu.pipeline_mode<synchronous>, transform_indices = @transform_14, window_bounds = array<i64: 1, 128>}, {pipeline_mode = #tpu.pipeline_mode<synchronous>, transform_indices = @transform_15, window_bounds = array<i64: 128, 128>}, {pipeline_mode = #tpu.pipeline_mode<synchronous>, transform_indices = @transform_16, window_bounds = array<i64: 1, 128>}, {pipeline_mode = #tpu.pipeline_mode<synchronous>, transform_indices = @transform_17, window_bounds = array<i64: 1, 128>}, {pipeline_mode = #tpu.pipeline_mode<synchronous>, transform_indices = @transform_18, window_bounds = array<i64: 1, 128>}, {pipeline_mode = #tpu.pipeline_mode<synchronous>, transform_indices = @transform_19, window_bounds = array<i64: 128, 128>}, {pipeline_mode = #tpu.pipeline_mode<synchronous>, transform_indices = @transform_20, window_bounds = array<i64: 1, 128>}, {transform_indices = @transform_21, window_bounds = array<i64: 1, 8, 128>}, {transform_indices = @transform_22, window_bounds = array<i64: 1, 8, 128>}]} {
    %c0 = arith.constant 0 : index
    %c0_0 = arith.constant 0 : index
    %c0_1 = arith.constant 0 : index
    %0 = vector.load %arg1[%c0, %c0_0, %c0_1] : memref<1x8x1024xf32, #tpu.memory_space<vmem>>, vector<1x8x1024xf32>
    %1 = vector.shape_cast %0 : vector<1x8x1024xf32> to vector<8x1024xf32>
    %2 = tpu.iota {dimensions = array<i32: 0>} : vector<8x1xi32>
    %c2_i32 = arith.constant 2 : i32
    %3 = vector.broadcast %c2_i32 : i32 to vector<8x1xi32>
    %4 = arith.cmpi slt, %2, %3 : vector<8x1xi32>
    %5 = arith.extui %4 : vector<8x1xi1> to vector<8x1xi32>
    %6 = arith.sitofp %5 : vector<8x1xi32> to vector<8x1xf32>
    %c0_2 = arith.constant 0 : index
    %c0_3 = arith.constant 0 : index
    %7 = vector.load %arg2[%c0_2, %c0_3] : memref<1024x128xf32, #tpu.memory_space<vmem>>, vector<1024x128xf32>
    %cst = arith.constant dense<0.000000e+00> : vector<8x128xf32>
    %8 = tpu.matmul %1, %7, %cst {dimension_numbers = #tpu.dot_dimension_numbers<[1], [0], [0], [1], [0, 0, 1, 1], [], []>} : vector<8x1024xf32>, vector<1024x128xf32>, vector<8x128xf32> -> vector<8x128xf32>
    %c0_4 = arith.constant 0 : index
    %c0_5 = arith.constant 0 : index
    %9 = vector.load %arg3[%c0_4, %c0_5] : memref<1x128xf32, #tpu.memory_space<vmem>>, vector<1x128xf32>
    %10 = vector.broadcast %9 : vector<1x128xf32> to vector<8x128xf32>
    %11 = arith.addf %8, %10 : vector<8x128xf32>
    %cst_6 = arith.constant 0.000000e+00 : f32
    %12 = vector.broadcast %cst_6 : f32 to vector<8x128xf32>
    %13 = arith.maximumf %11, %12 : vector<8x128xf32>
    %c0_7 = arith.constant 0 : index
    %c0_8 = arith.constant 0 : index
    %14 = vector.load %arg4[%c0_7, %c0_8] : memref<128x128xf32, #tpu.memory_space<vmem>>, vector<128x128xf32>
    %cst_9 = arith.constant dense<0.000000e+00> : vector<8x128xf32>
    %15 = tpu.matmul %13, %14, %cst_9 {dimension_numbers = #tpu.dot_dimension_numbers<[1], [0], [0], [1], [0, 0, 1, 1], [], []>} : vector<8x128xf32>, vector<128x128xf32>, vector<8x128xf32> -> vector<8x128xf32>
    %c0_10 = arith.constant 0 : index
    %c0_11 = arith.constant 0 : index
    %16 = vector.load %arg5[%c0_10, %c0_11] : memref<1x128xf32, #tpu.memory_space<vmem>>, vector<1x128xf32>
    %17 = vector.broadcast %16 : vector<1x128xf32> to vector<8x128xf32>
    %18 = arith.addf %15, %17 : vector<8x128xf32>
    %19 = vector.broadcast %6 : vector<8x1xf32> to vector<8x128xf32>
    %20 = arith.mulf %18, %19 : vector<8x128xf32>
    %cst_12 = arith.constant dense<0.000000e+00> : vector<128xf32>
    %21 = vector.multi_reduction <add>, %20, %cst_12 [0] : vector<8x128xf32> to vector<128xf32>
    %22 = vector.shape_cast %21 : vector<128xf32> to vector<1x128xf32>
    %cst_13 = arith.constant 5.000000e-01 : f32
    %23 = vector.broadcast %cst_13 : f32 to vector<1x128xf32>
    %24 = arith.mulf %22, %23 : vector<1x128xf32>
    %25 = vector.broadcast %24 : vector<1x128xf32> to vector<8x128xf32>
    %26 = arith.subf %18, %25 : vector<8x128xf32>
    %27 = arith.mulf %26, %26 : vector<8x128xf32>
    %28 = vector.broadcast %6 : vector<8x1xf32> to vector<8x128xf32>
    %29 = arith.mulf %27, %28 : vector<8x128xf32>
    %cst_14 = arith.constant dense<0.000000e+00> : vector<128xf32>
    %30 = vector.multi_reduction <add>, %29, %cst_14 [0] : vector<8x128xf32> to vector<128xf32>
    %31 = vector.shape_cast %30 : vector<128xf32> to vector<1x128xf32>
    %cst_15 = arith.constant 5.000000e-01 : f32
    %32 = vector.broadcast %cst_15 : f32 to vector<1x128xf32>
    %33 = arith.mulf %31, %32 : vector<1x128xf32>
    %cst_16 = arith.constant 9.99999974E-6 : f32
    %34 = vector.broadcast %cst_16 : f32 to vector<1x128xf32>
    %35 = arith.addf %33, %34 : vector<1x128xf32>
    %36 = math.rsqrt %35 : vector<1x128xf32>
    %37 = vector.broadcast %36 : vector<1x128xf32> to vector<8x128xf32>
    %38 = arith.mulf %26, %37 : vector<8x128xf32>
    %c0_17 = arith.constant 0 : index
    %c0_18 = arith.constant 0 : index
    %39 = vector.load %arg6[%c0_17, %c0_18] : memref<1x128xf32, #tpu.memory_space<vmem>>, vector<1x128xf32>
    %40 = vector.broadcast %39 : vector<1x128xf32> to vector<8x128xf32>
    %41 = arith.mulf %38, %40 : vector<8x128xf32>
    %c0_19 = arith.constant 0 : index
    %c0_20 = arith.constant 0 : index
    %42 = vector.load %arg7[%c0_19, %c0_20] : memref<1x128xf32, #tpu.memory_space<vmem>>, vector<1x128xf32>
    %43 = vector.broadcast %42 : vector<1x128xf32> to vector<8x128xf32>
    %44 = arith.addf %41, %43 : vector<8x128xf32>
    %cst_21 = arith.constant 0.000000e+00 : f32
    %45 = vector.broadcast %cst_21 : f32 to vector<8x128xf32>
    %46 = arith.maximumf %44, %45 : vector<8x128xf32>
    %c0_22 = arith.constant 0 : index
    %c0_23 = arith.constant 0 : index
    %47 = vector.load %arg8[%c0_22, %c0_23] : memref<128x128xf32, #tpu.memory_space<vmem>>, vector<128x128xf32>
    %cst_24 = arith.constant dense<0.000000e+00> : vector<8x128xf32>
    %48 = tpu.matmul %46, %47, %cst_24 {dimension_numbers = #tpu.dot_dimension_numbers<[1], [0], [0], [1], [0, 0, 1, 1], [], []>} : vector<8x128xf32>, vector<128x128xf32>, vector<8x128xf32> -> vector<8x128xf32>
    %c0_25 = arith.constant 0 : index
    %c0_26 = arith.constant 0 : index
    %49 = vector.load %arg9[%c0_25, %c0_26] : memref<1x128xf32, #tpu.memory_space<vmem>>, vector<1x128xf32>
    %50 = vector.broadcast %49 : vector<1x128xf32> to vector<8x128xf32>
    %51 = arith.addf %48, %50 : vector<8x128xf32>
    %52 = vector.broadcast %6 : vector<8x1xf32> to vector<8x128xf32>
    %53 = arith.mulf %51, %52 : vector<8x128xf32>
    %cst_27 = arith.constant dense<0.000000e+00> : vector<128xf32>
    %54 = vector.multi_reduction <add>, %53, %cst_27 [0] : vector<8x128xf32> to vector<128xf32>
    %55 = vector.shape_cast %54 : vector<128xf32> to vector<1x128xf32>
    %cst_28 = arith.constant 5.000000e-01 : f32
    %56 = vector.broadcast %cst_28 : f32 to vector<1x128xf32>
    %57 = arith.mulf %55, %56 : vector<1x128xf32>
    %58 = vector.broadcast %57 : vector<1x128xf32> to vector<8x128xf32>
    %59 = arith.subf %51, %58 : vector<8x128xf32>
    %60 = arith.mulf %59, %59 : vector<8x128xf32>
    %61 = vector.broadcast %6 : vector<8x1xf32> to vector<8x128xf32>
    %62 = arith.mulf %60, %61 : vector<8x128xf32>
    %cst_29 = arith.constant dense<0.000000e+00> : vector<128xf32>
    %63 = vector.multi_reduction <add>, %62, %cst_29 [0] : vector<8x128xf32> to vector<128xf32>
    %64 = vector.shape_cast %63 : vector<128xf32> to vector<1x128xf32>
    %cst_30 = arith.constant 5.000000e-01 : f32
    %65 = vector.broadcast %cst_30 : f32 to vector<1x128xf32>
    %66 = arith.mulf %64, %65 : vector<1x128xf32>
    %cst_31 = arith.constant 9.99999974E-6 : f32
    %67 = vector.broadcast %cst_31 : f32 to vector<1x128xf32>
    %68 = arith.addf %66, %67 : vector<1x128xf32>
    %69 = math.rsqrt %68 : vector<1x128xf32>
    %70 = vector.broadcast %69 : vector<1x128xf32> to vector<8x128xf32>
    %71 = arith.mulf %59, %70 : vector<8x128xf32>
    %c0_32 = arith.constant 0 : index
    %c0_33 = arith.constant 0 : index
    %72 = vector.load %arg10[%c0_32, %c0_33] : memref<1x128xf32, #tpu.memory_space<vmem>>, vector<1x128xf32>
    %73 = vector.broadcast %72 : vector<1x128xf32> to vector<8x128xf32>
    %74 = arith.mulf %71, %73 : vector<8x128xf32>
    %c0_34 = arith.constant 0 : index
    %c0_35 = arith.constant 0 : index
    %75 = vector.load %arg11[%c0_34, %c0_35] : memref<1x128xf32, #tpu.memory_space<vmem>>, vector<1x128xf32>
    %76 = vector.broadcast %75 : vector<1x128xf32> to vector<8x128xf32>
    %77 = arith.addf %74, %76 : vector<8x128xf32>
    %cst_36 = arith.constant 0.000000e+00 : f32
    %78 = vector.broadcast %cst_36 : f32 to vector<8x128xf32>
    %79 = arith.maximumf %77, %78 : vector<8x128xf32>
    %c0_37 = arith.constant 0 : index
    %c0_38 = arith.constant 0 : index
    %80 = vector.load %arg12[%c0_37, %c0_38] : memref<128x128xf32, #tpu.memory_space<vmem>>, vector<128x128xf32>
    %cst_39 = arith.constant dense<0.000000e+00> : vector<8x128xf32>
    %81 = tpu.matmul %79, %80, %cst_39 {dimension_numbers = #tpu.dot_dimension_numbers<[1], [0], [0], [1], [0, 0, 1, 1], [], []>} : vector<8x128xf32>, vector<128x128xf32>, vector<8x128xf32> -> vector<8x128xf32>
    %c0_40 = arith.constant 0 : index
    %c0_41 = arith.constant 0 : index
    %82 = vector.load %arg13[%c0_40, %c0_41] : memref<1x128xf32, #tpu.memory_space<vmem>>, vector<1x128xf32>
    %83 = vector.broadcast %82 : vector<1x128xf32> to vector<8x128xf32>
    %84 = arith.addf %81, %83 : vector<8x128xf32>
    %85 = vector.broadcast %6 : vector<8x1xf32> to vector<8x128xf32>
    %86 = arith.mulf %84, %85 : vector<8x128xf32>
    %cst_42 = arith.constant dense<0.000000e+00> : vector<128xf32>
    %87 = vector.multi_reduction <add>, %86, %cst_42 [0] : vector<8x128xf32> to vector<128xf32>
    %88 = vector.shape_cast %87 : vector<128xf32> to vector<1x128xf32>
    %cst_43 = arith.constant 5.000000e-01 : f32
    %89 = vector.broadcast %cst_43 : f32 to vector<1x128xf32>
    %90 = arith.mulf %88, %89 : vector<1x128xf32>
    %91 = vector.broadcast %90 : vector<1x128xf32> to vector<8x128xf32>
    %92 = arith.subf %84, %91 : vector<8x128xf32>
    %93 = arith.mulf %92, %92 : vector<8x128xf32>
    %94 = vector.broadcast %6 : vector<8x1xf32> to vector<8x128xf32>
    %95 = arith.mulf %93, %94 : vector<8x128xf32>
    %cst_44 = arith.constant dense<0.000000e+00> : vector<128xf32>
    %96 = vector.multi_reduction <add>, %95, %cst_44 [0] : vector<8x128xf32> to vector<128xf32>
    %97 = vector.shape_cast %96 : vector<128xf32> to vector<1x128xf32>
    %cst_45 = arith.constant 5.000000e-01 : f32
    %98 = vector.broadcast %cst_45 : f32 to vector<1x128xf32>
    %99 = arith.mulf %97, %98 : vector<1x128xf32>
    %cst_46 = arith.constant 9.99999974E-6 : f32
    %100 = vector.broadcast %cst_46 : f32 to vector<1x128xf32>
    %101 = arith.addf %99, %100 : vector<1x128xf32>
    %102 = math.rsqrt %101 : vector<1x128xf32>
    %103 = vector.broadcast %102 : vector<1x128xf32> to vector<8x128xf32>
    %104 = arith.mulf %92, %103 : vector<8x128xf32>
    %c0_47 = arith.constant 0 : index
    %c0_48 = arith.constant 0 : index
    %105 = vector.load %arg14[%c0_47, %c0_48] : memref<1x128xf32, #tpu.memory_space<vmem>>, vector<1x128xf32>
    %106 = vector.broadcast %105 : vector<1x128xf32> to vector<8x128xf32>
    %107 = arith.mulf %104, %106 : vector<8x128xf32>
    %c0_49 = arith.constant 0 : index
    %c0_50 = arith.constant 0 : index
    %108 = vector.load %arg15[%c0_49, %c0_50] : memref<1x128xf32, #tpu.memory_space<vmem>>, vector<1x128xf32>
    %109 = vector.broadcast %108 : vector<1x128xf32> to vector<8x128xf32>
    %110 = arith.addf %107, %109 : vector<8x128xf32>
    %c0_51 = arith.constant 0 : index
    %c0_52 = arith.constant 0 : index
    %111 = vector.load %arg16[%c0_51, %c0_52] : memref<128x128xf32, #tpu.memory_space<vmem>>, vector<128x128xf32>
    %cst_53 = arith.constant dense<0.000000e+00> : vector<8x128xf32>
    %112 = tpu.matmul %110, %111, %cst_53 {dimension_numbers = #tpu.dot_dimension_numbers<[1], [0], [0], [1], [0, 0, 1, 1], [], []>} : vector<8x128xf32>, vector<128x128xf32>, vector<8x128xf32> -> vector<8x128xf32>
    %c0_54 = arith.constant 0 : index
    %c0_55 = arith.constant 0 : index
    %113 = vector.load %arg17[%c0_54, %c0_55] : memref<1x128xf32, #tpu.memory_space<vmem>>, vector<1x128xf32>
    %114 = vector.broadcast %113 : vector<1x128xf32> to vector<8x128xf32>
    %115 = arith.addf %112, %114 : vector<8x128xf32>
    %116 = vector.broadcast %6 : vector<8x1xf32> to vector<8x128xf32>
    %117 = arith.mulf %115, %116 : vector<8x128xf32>
    %cst_56 = arith.constant dense<0.000000e+00> : vector<128xf32>
    %118 = vector.multi_reduction <add>, %117, %cst_56 [0] : vector<8x128xf32> to vector<128xf32>
    %119 = vector.shape_cast %118 : vector<128xf32> to vector<1x128xf32>
    %cst_57 = arith.constant 5.000000e-01 : f32
    %120 = vector.broadcast %cst_57 : f32 to vector<1x128xf32>
    %121 = arith.mulf %119, %120 : vector<1x128xf32>
    %122 = vector.broadcast %121 : vector<1x128xf32> to vector<8x128xf32>
    %123 = arith.subf %115, %122 : vector<8x128xf32>
    %124 = arith.mulf %123, %123 : vector<8x128xf32>
    %125 = vector.broadcast %6 : vector<8x1xf32> to vector<8x128xf32>
    %126 = arith.mulf %124, %125 : vector<8x128xf32>
    %cst_58 = arith.constant dense<0.000000e+00> : vector<128xf32>
    %127 = vector.multi_reduction <add>, %126, %cst_58 [0] : vector<8x128xf32> to vector<128xf32>
    %128 = vector.shape_cast %127 : vector<128xf32> to vector<1x128xf32>
    %cst_59 = arith.constant 5.000000e-01 : f32
    %129 = vector.broadcast %cst_59 : f32 to vector<1x128xf32>
    %130 = arith.mulf %128, %129 : vector<1x128xf32>
    %cst_60 = arith.constant 9.99999974E-6 : f32
    %131 = vector.broadcast %cst_60 : f32 to vector<1x128xf32>
    %132 = arith.addf %130, %131 : vector<1x128xf32>
    %133 = math.rsqrt %132 : vector<1x128xf32>
    %134 = vector.broadcast %133 : vector<1x128xf32> to vector<8x128xf32>
    %135 = arith.mulf %123, %134 : vector<8x128xf32>
    %c0_61 = arith.constant 0 : index
    %c0_62 = arith.constant 0 : index
    %136 = vector.load %arg18[%c0_61, %c0_62] : memref<1x128xf32, #tpu.memory_space<vmem>>, vector<1x128xf32>
    %137 = vector.broadcast %136 : vector<1x128xf32> to vector<8x128xf32>
    %138 = arith.mulf %135, %137 : vector<8x128xf32>
    %c0_63 = arith.constant 0 : index
    %c0_64 = arith.constant 0 : index
    %139 = vector.load %arg19[%c0_63, %c0_64] : memref<1x128xf32, #tpu.memory_space<vmem>>, vector<1x128xf32>
    %140 = vector.broadcast %139 : vector<1x128xf32> to vector<8x128xf32>
    %141 = arith.addf %138, %140 : vector<8x128xf32>
    %cst_65 = arith.constant 0.000000e+00 : f32
    %142 = vector.broadcast %cst_65 : f32 to vector<8x128xf32>
    %143 = arith.maximumf %141, %142 : vector<8x128xf32>
    %c0_66 = arith.constant 0 : index
    %c0_67 = arith.constant 0 : index
    %144 = vector.load %arg20[%c0_66, %c0_67] : memref<128x128xf32, #tpu.memory_space<vmem>>, vector<128x128xf32>
    %cst_68 = arith.constant dense<0.000000e+00> : vector<8x128xf32>
    %145 = tpu.matmul %143, %144, %cst_68 {dimension_numbers = #tpu.dot_dimension_numbers<[1], [0], [0], [1], [0, 0, 1, 1], [], []>} : vector<8x128xf32>, vector<128x128xf32>, vector<8x128xf32> -> vector<8x128xf32>
    %c0_69 = arith.constant 0 : index
    %c0_70 = arith.constant 0 : index
    %146 = vector.load %arg21[%c0_69, %c0_70] : memref<1x128xf32, #tpu.memory_space<vmem>>, vector<1x128xf32>
    %147 = vector.broadcast %146 : vector<1x128xf32> to vector<8x128xf32>
    %148 = arith.addf %145, %147 : vector<8x128xf32>
    %c0_71 = arith.constant 0 : index
    %c0_72 = arith.constant 0 : index
    %c0_73 = arith.constant 0 : index
    %149 = vector.load %arg22[%c0_71, %c0_72, %c0_73] : memref<1x8x128xf32, #tpu.memory_space<vmem>>, vector<1x8x128xf32>
    %150 = vector.shape_cast %149 : vector<1x8x128xf32> to vector<8x128xf32>
    %151 = vector.shape_cast %110 : vector<8x128xf32> to vector<1x8x128xf32>
    tpu.vector_store %arg22[%c0_71, %c0_72, %c0_73], %151 {strides = array<i32>} : memref<1x8x128xf32, #tpu.memory_space<vmem>>, vector<1x8x128xf32>,
    %c0_74 = arith.constant 0 : index
    %c0_75 = arith.constant 0 : index
    %c0_76 = arith.constant 0 : index
    %152 = vector.load %arg23[%c0_74, %c0_75, %c0_76] : memref<1x8x128xf32, #tpu.memory_space<vmem>>, vector<1x8x128xf32>
    %153 = vector.shape_cast %152 : vector<1x8x128xf32> to vector<8x128xf32>
    %154 = vector.shape_cast %148 : vector<8x128xf32> to vector<1x8x128xf32>
    tpu.vector_store %arg23[%c0_74, %c0_75, %c0_76], %154 {strides = array<i32>} : memref<1x8x128xf32, #tpu.memory_space<vmem>>, vector<1x8x128xf32>,
    return
  }
  func.func @transform_0(%arg0: i32) -> (i32, i32, i32) {
    %c0_i32 = arith.constant 0 : i32
    %c0_i32_0 = arith.constant 0 : i32
    %c0_i32_1 = arith.constant 0 : i32
    return %arg0, %c0_i32, %c0_i32_0 : i32, i32, i32
  }
  func.func @transform_1(%arg0: i32) -> (i32, i32) {
    %c0_i32 = arith.constant 0 : i32
    %c0_i32_0 = arith.constant 0 : i32
    %c0_i32_1 = arith.constant 0 : i32
    return %c0_i32, %c0_i32_0 : i32, i32
  }
  func.func @transform_2(%arg0: i32) -> (i32, i32) {
    %c0_i32 = arith.constant 0 : i32
    %c0_i32_0 = arith.constant 0 : i32
    %c0_i32_1 = arith.constant 0 : i32
    return %c0_i32, %c0_i32_0 : i32, i32
  }
  func.func @transform_3(%arg0: i32) -> (i32, i32) {
    %c0_i32 = arith.constant 0 : i32
    %c0_i32_0 = arith.constant 0 : i32
    %c0_i32_1 = arith.constant 0 : i32
    return %c0_i32, %c0_i32_0 : i32, i32
  }
  func.func @transform_4(%arg0: i32) -> (i32, i32) {
    %c0_i32 = arith.constant 0 : i32
    %c0_i32_0 = arith.constant 0 : i32
    %c0_i32_1 = arith.constant 0 : i32
    return %c0_i32, %c0_i32_0 : i32, i32
  }
  func.func @transform_5(%arg0: i32) -> (i32, i32) {
    %c0_i32 = arith.constant 0 : i32
    %c0_i32_0 = arith.constant 0 : i32
    %c0_i32_1 = arith.constant 0 : i32
    return %c0_i32, %c0_i32_0 : i32, i32
  }
  func.func @transform_6(%arg0: i32) -> (i32, i32) {
    %c0_i32 = arith.constant 0 : i32
    %c0_i32_0 = arith.constant 0 : i32
    %c0_i32_1 = arith.constant 0 : i32
    return %c0_i32, %c0_i32_0 : i32, i32
  }
  func.func @transform_7(%arg0: i32) -> (i32, i32) {
    %c0_i32 = arith.constant 0 : i32
    %c0_i32_0 = arith.constant 0 : i32
    %c0_i32_1 = arith.constant 0 : i32
    return %c0_i32, %c0_i32_0 : i32, i32
  }
  func.func @transform_8(%arg0: i32) -> (i32, i32) {
    %c0_i32 = arith.constant 0 : i32
    %c0_i32_0 = arith.constant 0 : i32
    %c0_i32_1 = arith.constant 0 : i32
    return %c0_i32, %c0_i32_0 : i32, i32
  }
  func.func @transform_9(%arg0: i32) -> (i32, i32) {
    %c0_i32 = arith.constant 0 : i32
    %c0_i32_0 = arith.constant 0 : i32
    %c0_i32_1 = arith.constant 0 : i32
    return %c0_i32, %c0_i32_0 : i32, i32
  }
  func.func @transform_10(%arg0: i32) -> (i32, i32) {
    %c0_i32 = arith.constant 0 : i32
    %c0_i32_0 = arith.constant 0 : i32
    %c0_i32_1 = arith.constant 0 : i32
    return %c0_i32, %c0_i32_0 : i32, i32
  }
  func.func @transform_11(%arg0: i32) -> (i32, i32) {
    %c0_i32 = arith.constant 0 : i32
    %c0_i32_0 = arith.constant 0 : i32
    %c0_i32_1 = arith.constant 0 : i32
    return %c0_i32, %c0_i32_0 : i32, i32
  }
  func.func @transform_12(%arg0: i32) -> (i32, i32) {
    %c0_i32 = arith.constant 0 : i32
    %c0_i32_0 = arith.constant 0 : i32
    %c0_i32_1 = arith.constant 0 : i32
    return %c0_i32, %c0_i32_0 : i32, i32
  }
  func.func @transform_13(%arg0: i32) -> (i32, i32) {
    %c0_i32 = arith.constant 0 : i32
    %c0_i32_0 = arith.constant 0 : i32
    %c0_i32_1 = arith.constant 0 : i32
    return %c0_i32, %c0_i32_0 : i32, i32
  }
  func.func @transform_14(%arg0: i32) -> (i32, i32) {
    %c0_i32 = arith.constant 0 : i32
    %c0_i32_0 = arith.constant 0 : i32
    %c0_i32_1 = arith.constant 0 : i32
    return %c0_i32, %c0_i32_0 : i32, i32
  }
  func.func @transform_15(%arg0: i32) -> (i32, i32) {
    %c0_i32 = arith.constant 0 : i32
    %c0_i32_0 = arith.constant 0 : i32
    %c0_i32_1 = arith.constant 0 : i32
    return %c0_i32, %c0_i32_0 : i32, i32
  }
  func.func @transform_16(%arg0: i32) -> (i32, i32) {
    %c0_i32 = arith.constant 0 : i32
    %c0_i32_0 = arith.constant 0 : i32
    %c0_i32_1 = arith.constant 0 : i32
    return %c0_i32, %c0_i32_0 : i32, i32
  }
  func.func @transform_17(%arg0: i32) -> (i32, i32) {
    %c0_i32 = arith.constant 0 : i32
    %c0_i32_0 = arith.constant 0 : i32
    %c0_i32_1 = arith.constant 0 : i32
    return %c0_i32, %c0_i32_0 : i32, i32
  }
  func.func @transform_18(%arg0: i32) -> (i32, i32) {
    %c0_i32 = arith.constant 0 : i32
    %c0_i32_0 = arith.constant 0 : i32
    %c0_i32_1 = arith.constant 0 : i32
    return %c0_i32, %c0_i32_0 : i32, i32
  }
  func.func @transform_19(%arg0: i32) -> (i32, i32) {
    %c0_i32 = arith.constant 0 : i32
    %c0_i32_0 = arith.constant 0 : i32
    %c0_i32_1 = arith.constant 0 : i32
    return %c0_i32, %c0_i32_0 : i32, i32
  }
  func.func @transform_20(%arg0: i32) -> (i32, i32) {
    %c0_i32 = arith.constant 0 : i32
    %c0_i32_0 = arith.constant 0 : i32
    %c0_i32_1 = arith.constant 0 : i32
    return %c0_i32, %c0_i32_0 : i32, i32
  }
  func.func @transform_21(%arg0: i32) -> (i32, i32, i32) {
    %c0_i32 = arith.constant 0 : i32
    %c0_i32_0 = arith.constant 0 : i32
    %c0_i32_1 = arith.constant 0 : i32
    return %arg0, %c0_i32, %c0_i32_0 : i32, i32, i32
  }
  func.func @transform_22(%arg0: i32) -> (i32, i32, i32) {
    %c0_i32 = arith.constant 0 : i32
    %c0_i32_0 = arith.constant 0 : i32
    %c0_i32_1 = arith.constant 0 : i32
    return %arg0, %c0_i32, %c0_i32_0 : i32, i32, i32
  }
}

</mosaic_0001>

<llo_original>
// kernel: tpu_custom_call.1
$region0: #{tpu_custom_call.1}
  #allocation0 [shape = 'u32[]', space=smem, size = 0x4, offset = 0x4, fixed_abs, tag = 'smem constant byte address 0x4 - core index']
  #allocation1 [shape = 'u32[144,128]{1,0:T(1,128)}', space=vmem, size = 0x12000, scoped, tag = 'internal scratch']
  %s0 = inlined_call_operand.hbm [shape: f32[2,8,1024], index: 0, kind: input, shape index: {}]
  %s1 = inlined_call_operand.hbm [shape: f32[1024,128], index: 1, kind: input, shape index: {}]
  %s2 = inlined_call_operand.vmem [shape: f32[1,128], index: 2, kind: input, shape index: {}]
  %s3 = inlined_call_operand.hbm [shape: f32[128,128], index: 3, kind: input, shape index: {}]
  %s4 = inlined_call_operand.vmem [shape: f32[1,128], index: 4, kind: input, shape index: {}]
  %s5 = inlined_call_operand.vmem [shape: f32[1,128], index: 5, kind: input, shape index: {}]
  %s6 = inlined_call_operand.vmem [shape: f32[1,128], index: 6, kind: input, shape index: {}]
  %s7 = inlined_call_operand.hbm [shape: f32[128,128], index: 7, kind: input, shape index: {}]
  %s8 = inlined_call_operand.vmem [shape: f32[1,128], index: 8, kind: input, shape index: {}]
  %s9 = inlined_call_operand.vmem [shape: f32[1,128], index: 9, kind: input, shape index: {}]
  %s10 = inlined_call_operand.vmem [shape: f32[1,128], index: 10, kind: input, shape index: {}]
  %s11 = inlined_call_operand.hbm [shape: f32[128,128], index: 11, kind: input, shape index: {}]
  %s12 = inlined_call_operand.vmem [shape: f32[1,128], index: 12, kind: input, shape index: {}]
  %s13 = inlined_call_operand.vmem [shape: f32[1,128], index: 13, kind: input, shape index: {}]
  %s14 = inlined_call_operand.vmem [shape: f32[1,128], index: 14, kind: input, shape index: {}]
  %s15 = inlined_call_operand.hbm [shape: f32[128,128], index: 15, kind: input, shape index: {}]
  %s16 = inlined_call_operand.vmem [shape: f32[1,128], index: 16, kind: input, shape index: {}]
  %s17 = inlined_call_operand.vmem [shape: f32[1,128], index: 17, kind: input, shape index: {}]
  %s18 = inlined_call_operand.vmem [shape: f32[1,128], index: 18, kind: input, shape index: {}]
  %s19 = inlined_call_operand.hbm [shape: f32[128,128], index: 19, kind: input, shape index: {}]
  %s20 = inlined_call_operand.vmem [shape: f32[1,128], index: 20, kind: input, shape index: {}]
  %s21 = inlined_call_operand.hbm [shape: f32[2,8,128], index: 21, kind: output, shape index: {0}]
  %s22 = inlined_call_operand.hbm [shape: f32[2,8,128], index: 22, kind: output, shape index: {1}]
  %23 = xla_tuple %s21, %s22
  %s24 = sld [smem:[#allocation0]]
  $region153: #{tpu_custom_call.1} parent=0
    _
  %s26 = ssub.s32 1, %s24
  %s27 = scalar_select 0, %s26, %s24
  $region1: #{tpu_custom_call.1} parent=0
    #allocation2 [shape = 'u8[65536]{0}', space=vmem, size = 0x10000, scoped, tag = 'input window, operand 0']
    #allocation3 [shape = 's32[2]{0}', space=sflag, size = 0x8, scoped, tag = 'scoped memory for tpu_custom_call.1']
    #allocation4 [shape = 's32[2]{0}', space=sflag, size = 0x8, scoped, tag = 'scoped memory for tpu_custom_call.1']
    #allocation5 [shape = 'u8[524288]{0}', space=vmem, size = 0x80000, scoped, tag = 'input window, operand 1, single buffered']
    #allocation6 [shape = 's32[1]{0}', space=sflag, size = 0x4, scoped, tag = 'scoped memory for tpu_custom_call.1']
    #allocation7 [shape = 'u8[65536]{0}', space=vmem, size = 0x10000, scoped, tag = 'input window, operand 3, single buffered']
    #allocation8 [shape = 'u8[65536]{0}', space=vmem, size = 0x10000, scoped, tag = 'input window, operand 7, single buffered']
    #allocation9 [shape = 's32[1]{0}', space=sflag, size = 0x4, scoped, tag = 'scoped memory for tpu_custom_call.1']
    #allocation10 [shape = 'u8[65536]{0}', space=vmem, size = 0x10000, scoped, tag = 'input window, operand 11, single buffered']
    #allocation11 [shape = 'u8[65536]{0}', space=vmem, size = 0x10000, scoped, tag = 'input window, operand 15, single buffered']
    #allocation12 [shape = 's32[1]{0}', space=sflag, size = 0x4, scoped, tag = 'scoped memory for tpu_custom_call.1']
    #allocation13 [shape = 'u8[65536]{0}', space=vmem, size = 0x10000, scoped, tag = 'input window, operand 19, single buffered']
    #allocation14 [shape = 'u8[8192]{0}', space=vmem, size = 0x2000, scoped, tag = 'output window, operand 0']
    #allocation15 [shape = 'u8[8192]{0}', space=vmem, size = 0x2000, scoped, tag = 'output window, operand 1']
    #allocation16 [shape = 's32[2]{0}', space=sflag, size = 0x8, scoped, tag = 'scoped memory for tpu_custom_call.1']
    %28 = vsyncpa [#allocation3], 0
    %s29 = scalar_lea.sflag [#allocation3], 1
    %30 = vsyncpa %s29, 0
    %31 = vsyncpa [#allocation6], 0
    %32 = vsyncpa [#allocation9], 0
    %33 = vsyncpa [#allocation12], 0
    %34 = vsyncpa [#allocation4], 0
    %s35 = scalar_lea.sflag [#allocation4], 1
    %36 = vsyncpa %s35, 0
    %37 = vsyncpa [#allocation16], 0
    %s38 = scalar_lea.sflag [#allocation16], 1
    %39 = vsyncpa %s38, 0
    loop: start=0, step=1, limit=4
    $region2: #{tpu_custom_call.1} parent=1 // loop_pre_header
      _
    $region3: #{tpu_custom_call.1} parent=1 // loop_header
      %s41 = sphi 0, %s45
      %p42 = scmp.ge.s32.totalorder %s41, 4
      %s51 = sphi 0, %s53
      %s54 = sphi 0, %s51
      %s55 = sphi 0, %s54
      %s71 = sphi 0, %s55
      %s75 = sphi 0, %s75
      %s77 = sphi 0, %s75
      %s78 = sphi 0, %s77
      %s92 = sphi 0, %s78
      %s96 = sphi 0, %s96
      %s98 = sphi 0, %s96
      %s99 = sphi 0, %s98
      %s113 = sphi 0, %s99
      %s117 = sphi 0, %s117
      %s119 = sphi 0, %s117
      %s120 = sphi 0, %s119
      %s134 = sphi 0, %s120
      %s138 = sphi 0, %s138
      %s140 = sphi 0, %s138
      %s141 = sphi 0, %s140
      %s155 = sphi 0, %s141
      %s159 = sphi 0, %s159
      %s161 = sphi 0, %s159
      %s162 = sphi 0, %s161
      %s176 = sphi 0, %s162
      %s180 = sphi 0, %s180
      %s182 = sphi 0, %s180
      %s183 = sphi 0, %s182
      %s197 = sphi 0, %s183
      %s201 = sphi 0, %s201
      %s203 = sphi 0, %s201
      %s204 = sphi 0, %s203
      %s218 = sphi 0, %s204
      %s222 = sphi 0, %s222
      %s224 = sphi 0, %s222
      %s225 = sphi 0, %s224
      %s239 = sphi 0, %s225
      %s243 = sphi 0, %s243
      %s245 = sphi 0, %s243
      %s246 = sphi 0, %s245
      %s260 = sphi 0, %s246
      %s264 = sphi 0, %s264
      %s266 = sphi 0, %s264
      %s267 = sphi 0, %s266
      %s281 = sphi 0, %s267
      %s285 = sphi 0, %s285
      %s287 = sphi 0, %s285
      %s288 = sphi 0, %s287
      %s302 = sphi 0, %s288
      %s306 = sphi 0, %s306
      %s308 = sphi 0, %s306
      %s309 = sphi 0, %s308
      %s323 = sphi 0, %s309
      %s327 = sphi 0, %s327
      %s329 = sphi 0, %s327
      %s330 = sphi 0, %s329
      %s344 = sphi 0, %s330
      %s348 = sphi 0, %s348
      %s350 = sphi 0, %s348
      %s351 = sphi 0, %s350
      %s365 = sphi 0, %s351
      %s369 = sphi 0, %s369
      %s371 = sphi 0, %s369
      %s372 = sphi 0, %s371
      %s386 = sphi 0, %s372
      %s390 = sphi 0, %s390
      %s392 = sphi 0, %s390
      %s393 = sphi 0, %s392
      %s407 = sphi 0, %s393
      %s411 = sphi 0, %s411
      %s413 = sphi 0, %s411
      %s414 = sphi 0, %s413
      %s428 = sphi 0, %s414
      %s432 = sphi 0, %s432
      %s434 = sphi 0, %s432
      %s435 = sphi 0, %s434
      %s449 = sphi 0, %s435
      %s453 = sphi 0, %s453
      %s455 = sphi 0, %s453
      %s456 = sphi 0, %s455
      %s470 = sphi 0, %s456
      %s474 = sphi 0, %s474
      %s476 = sphi 0, %s474
      %s477 = sphi 0, %s476
      %s491 = sphi 0, %s477
      %s497 = sphi 0, %s499
      %s500 = sphi 0, %s497
      %s501 = sphi 0, %s500
      %s517 = sphi 0, %s501
      %s523 = sphi 0, %s525
      %s526 = sphi 0, %s523
      %s527 = sphi 0, %s526
      %s543 = sphi 0, %s527
    $region4: #{tpu_custom_call.1} parent=1 // loop_header_branch
      %44 = sbr.rel (%p42) target = $region8
    $region5: #{tpu_custom_call.1} parent=1 // loop_body
      %s46 = ssub.s32 %s41, 1
      %s47 = ssub.s32 %s41, 2
      %s48 = sadd.s32 %s41, 1
      %s49 = ssub.s32 %s41, %s48
      %p50 = scmp.eq.s32.totalorder %s49, 0
      %s52 = sadd.s32 %s51, 1
      %s53 = scalar_select %p50, %s51, %s52
      %p56 = pneg %p50
      %p57 = scmp.eq.s32.totalorder %s41, 1
      %p58 = por %p56, %p57
      %p59 = scmp.ne.s32.totalorder %s51, %s54
      %p60 = scmp.eq.s32.totalorder %s41, 0
      %p61 = por %p59, %p60
      %p62 = scmp.ne.s32.totalorder %s51, %s54
      %p63 = scmp.eq.s32.totalorder %s46, 1
      %p64 = por %p62, %p63
      %p65 = scmp.ne.s32.totalorder %s54, %s55
      %p66 = scmp.eq.s32.totalorder %s46, 0
      %p67 = por %p65, %p66
      %p68 = scmp.ne.s32.totalorder %s54, %s55
      %p69 = scmp.eq.s32.totalorder %s47, 1
      %p70 = por %p68, %p69
      %p72 = scmp.ne.s32.totalorder %s55, %s71
      %p73 = scmp.eq.s32.totalorder %s47, 0
      %p74 = por %p72, %p73
      %s76 = sadd.s32 %s75, 1
      %p79 = scmp.eq.s32.totalorder %s41, 1
      %p80 = scmp.ne.s32.totalorder %s75, %s77
      %p81 = scmp.eq.s32.totalorder %s41, 0
      %p82 = por %p80, %p81
      %p83 = scmp.ne.s32.totalorder %s75, %s77
      %p84 = scmp.eq.s32.totalorder %s46, 1
      %p85 = por %p83, %p84
      %p86 = scmp.ne.s32.totalorder %s77, %s78
      %p87 = scmp.eq.s32.totalorder %s46, 0
      %p88 = por %p86, %p87
      %p89 = scmp.ne.s32.totalorder %s77, %s78
      %p90 = scmp.eq.s32.totalorder %s47, 1
      %p91 = por %p89, %p90
      %p93 = scmp.ne.s32.totalorder %s78, %s92
      %p94 = scmp.eq.s32.totalorder %s47, 0
      %p95 = por %p93, %p94
      %s97 = sadd.s32 %s96, 1
      %p100 = scmp.eq.s32.totalorder %s41, 1
      %p101 = scmp.ne.s32.totalorder %s96, %s98
      %p102 = scmp.eq.s32.totalorder %s41, 0
      %p103 = por %p101, %p102
      %p104 = scmp.ne.s32.totalorder %s96, %s98
      %p105 = scmp.eq.s32.totalorder %s46, 1
      %p106 = por %p104, %p105
      %p107 = scmp.ne.s32.totalorder %s98, %s99
      %p108 = scmp.eq.s32.totalorder %s46, 0
      %p109 = por %p107, %p108
      %p110 = scmp.ne.s32.totalorder %s98, %s99
      %p111 = scmp.eq.s32.totalorder %s47, 1
      %p112 = por %p110, %p111
      %p114 = scmp.ne.s32.totalorder %s99, %s113
      %p115 = scmp.eq.s32.totalorder %s47, 0
      %p116 = por %p114, %p115
      %s118 = sadd.s32 %s117, 1
      %p121 = scmp.eq.s32.totalorder %s41, 1
      %p122 = scmp.ne.s32.totalorder %s117, %s119
      %p123 = scmp.eq.s32.totalorder %s41, 0
      %p124 = por %p122, %p123
      %p125 = scmp.ne.s32.totalorder %s117, %s119
      %p126 = scmp.eq.s32.totalorder %s46, 1
      %p127 = por %p125, %p126
      %p128 = scmp.ne.s32.totalorder %s119, %s120
      %p129 = scmp.eq.s32.totalorder %s46, 0
      %p130 = por %p128, %p129
      %p131 = scmp.ne.s32.totalorder %s119, %s120
      %p132 = scmp.eq.s32.totalorder %s47, 1
      %p133 = por %p131, %p132
      %p135 = scmp.ne.s32.totalorder %s120, %s134
      %p136 = scmp.eq.s32.totalorder %s47, 0
      %p137 = por %p135, %p136
      %s139 = sadd.s32 %s138, 1
      %p142 = scmp.eq.s32.totalorder %s41, 1
      %p143 = scmp.ne.s32.totalorder %s138, %s140
      %p144 = scmp.eq.s32.totalorder %s41, 0
      %p145 = por %p143, %p144
      %p146 = scmp.ne.s32.totalorder %s138, %s140
      %p147 = scmp.eq.s32.totalorder %s46, 1
      %p148 = por %p146, %p147
      %p149 = scmp.ne.s32.totalorder %s140, %s141
      %p150 = scmp.eq.s32.totalorder %s46, 0
      %p151 = por %p149, %p150
      %p152 = scmp.ne.s32.totalorder %s140, %s141
      %p153 = scmp.eq.s32.totalorder %s47, 1
      %p154 = por %p152, %p153
      %p156 = scmp.ne.s32.totalorder %s141, %s155
      %p157 = scmp.eq.s32.totalorder %s47, 0
      %p158 = por %p156, %p157
      %s160 = sadd.s32 %s159, 1
      %p163 = scmp.eq.s32.totalorder %s41, 1
      %p164 = scmp.ne.s32.totalorder %s159, %s161
      %p165 = scmp.eq.s32.totalorder %s41, 0
      %p166 = por %p164, %p165
      %p167 = scmp.ne.s32.totalorder %s159, %s161
      %p168 = scmp.eq.s32.totalorder %s46, 1
      %p169 = por %p167, %p168
      %p170 = scmp.ne.s32.totalorder %s161, %s162
      %p171 = scmp.eq.s32.totalorder %s46, 0
      %p172 = por %p170, %p171
      %p173 = scmp.ne.s32.totalorder %s161, %s162
      %p174 = scmp.eq.s32.totalorder %s47, 1
      %p175 = por %p173, %p174
      %p177 = scmp.ne.s32.totalorder %s162, %s176
      %p178 = scmp.eq.s32.totalorder %s47, 0
      %p179 = por %p177, %p178
      %s181 = sadd.s32 %s180, 1
      %p184 = scmp.eq.s32.totalorder %s41, 1
      %p185 = scmp.ne.s32.totalorder %s180, %s182
      %p186 = scmp.eq.s32.totalorder %s41, 0
      %p187 = por %p185, %p186
      %p188 = scmp.ne.s32.totalorder %s180, %s182
      %p189 = scmp.eq.s32.totalorder %s46, 1
      %p190 = por %p188, %p189
      %p191 = scmp.ne.s32.totalorder %s182, %s183
      %p192 = scmp.eq.s32.totalorder %s46, 0
      %p193 = por %p191, %p192
      %p194 = scmp.ne.s32.totalorder %s182, %s183
      %p195 = scmp.eq.s32.totalorder %s47, 1
      %p196 = por %p194, %p195
      %p198 = scmp.ne.s32.totalorder %s183, %s197
      %p199 = scmp.eq.s32.totalorder %s47, 0
      %p200 = por %p198, %p199
      %s202 = sadd.s32 %s201, 1
      %p205 = scmp.eq.s32.totalorder %s41, 1
      %p206 = scmp.ne.s32.totalorder %s201, %s203
      %p207 = scmp.eq.s32.totalorder %s41, 0
      %p208 = por %p206, %p207
      %p209 = scmp.ne.s32.totalorder %s201, %s203
      %p210 = scmp.eq.s32.totalorder %s46, 1
      %p211 = por %p209, %p210
      %p212 = scmp.ne.s32.totalorder %s203, %s204
      %p213 = scmp.eq.s32.totalorder %s46, 0
      %p214 = por %p212, %p213
      %p215 = scmp.ne.s32.totalorder %s203, %s204
      %p216 = scmp.eq.s32.totalorder %s47, 1
      %p217 = por %p215, %p216
      %p219 = scmp.ne.s32.totalorder %s204, %s218
      %p220 = scmp.eq.s32.totalorder %s47, 0
      %p221 = por %p219, %p220
      %s223 = sadd.s32 %s222, 1
      %p226 = scmp.eq.s32.totalorder %s41, 1
      %p227 = scmp.ne.s32.totalorder %s222, %s224
      %p228 = scmp.eq.s32.totalorder %s41, 0
      %p229 = por %p227, %p228
      %p230 = scmp.ne.s32.totalorder %s222, %s224
      %p231 = scmp.eq.s32.totalorder %s46, 1
      %p232 = por %p230, %p231
      %p233 = scmp.ne.s32.totalorder %s224, %s225
      %p234 = scmp.eq.s32.totalorder %s46, 0
      %p235 = por %p233, %p234
      %p236 = scmp.ne.s32.totalorder %s224, %s225
      %p237 = scmp.eq.s32.totalorder %s47, 1
      %p238 = por %p236, %p237
      %p240 = scmp.ne.s32.totalorder %s225, %s239
      %p241 = scmp.eq.s32.totalorder %s47, 0
      %p242 = por %p240, %p241
      %s244 = sadd.s32 %s243, 1
      %p247 = scmp.eq.s32.totalorder %s41, 1
      %p248 = scmp.ne.s32.totalorder %s243, %s245
      %p249 = scmp.eq.s32.totalorder %s41, 0
      %p250 = por %p248, %p249
      %p251 = scmp.ne.s32.totalorder %s243, %s245
      %p252 = scmp.eq.s32.totalorder %s46, 1
      %p253 = por %p251, %p252
      %p254 = scmp.ne.s32.totalorder %s245, %s246
      %p255 = scmp.eq.s32.totalorder %s46, 0
      %p256 = por %p254, %p255
      %p257 = scmp.ne.s32.totalorder %s245, %s246
      %p258 = scmp.eq.s32.totalorder %s47, 1
      %p259 = por %p257, %p258
      %p261 = scmp.ne.s32.totalorder %s246, %s260
      %p262 = scmp.eq.s32.totalorder %s47, 0
      %p263 = por %p261, %p262
      %s265 = sadd.s32 %s264, 1
      %p268 = scmp.eq.s32.totalorder %s41, 1
      %p269 = scmp.ne.s32.totalorder %s264, %s266
      %p270 = scmp.eq.s32.totalorder %s41, 0
      %p271 = por %p269, %p270
      %p272 = scmp.ne.s32.totalorder %s264, %s266
      %p273 = scmp.eq.s32.totalorder %s46, 1
      %p274 = por %p272, %p273
      %p275 = scmp.ne.s32.totalorder %s266, %s267
      %p276 = scmp.eq.s32.totalorder %s46, 0
      %p277 = por %p275, %p276
      %p278 = scmp.ne.s32.totalorder %s266, %s267
      %p279 = scmp.eq.s32.totalorder %s47, 1
      %p280 = por %p278, %p279
      %p282 = scmp.ne.s32.totalorder %s267, %s281
      %p283 = scmp.eq.s32.totalorder %s47, 0
      %p284 = por %p282, %p283
      %s286 = sadd.s32 %s285, 1
      %p289 = scmp.eq.s32.totalorder %s41, 1
      %p290 = scmp.ne.s32.totalorder %s285, %s287
      %p291 = scmp.eq.s32.totalorder %s41, 0
      %p292 = por %p290, %p291
      %p293 = scmp.ne.s32.totalorder %s285, %s287
      %p294 = scmp.eq.s32.totalorder %s46, 1
      %p295 = por %p293, %p294
      %p296 = scmp.ne.s32.totalorder %s287, %s288
      %p297 = scmp.eq.s32.totalorder %s46, 0
      %p298 = por %p296, %p297
      %p299 = scmp.ne.s32.totalorder %s287, %s288
      %p300 = scmp.eq.s32.totalorder %s47, 1
      %p301 = por %p299, %p300
      %p303 = scmp.ne.s32.totalorder %s288, %s302
      %p304 = scmp.eq.s32.totalorder %s47, 0
      %p305 = por %p303, %p304
      %s307 = sadd.s32 %s306, 1
      %p310 = scmp.eq.s32.totalorder %s41, 1
      %p311 = scmp.ne.s32.totalorder %s306, %s308
      %p312 = scmp.eq.s32.totalorder %s41, 0
      %p313 = por %p311, %p312
      %p314 = scmp.ne.s32.totalorder %s306, %s308
      %p315 = scmp.eq.s32.totalorder %s46, 1
      %p316 = por %p314, %p315
      %p317 = scmp.ne.s32.totalorder %s308, %s309
      %p318 = scmp.eq.s32.totalorder %s46, 0
      %p319 = por %p317, %p318
      %p320 = scmp.ne.s32.totalorder %s308, %s309
      %p321 = scmp.eq.s32.totalorder %s47, 1
      %p322 = por %p320, %p321
      %p324 = scmp.ne.s32.totalorder %s309, %s323
      %p325 = scmp.eq.s32.totalorder %s47, 0
      %p326 = por %p324, %p325
      %s328 = sadd.s32 %s327, 1
      %p331 = scmp.eq.s32.totalorder %s41, 1
      %p332 = scmp.ne.s32.totalorder %s327, %s329
      %p333 = scmp.eq.s32.totalorder %s41, 0
      %p334 = por %p332, %p333
      %p335 = scmp.ne.s32.totalorder %s327, %s329
      %p336 = scmp.eq.s32.totalorder %s46, 1
      %p337 = por %p335, %p336
      %p338 = scmp.ne.s32.totalorder %s329, %s330
      %p339 = scmp.eq.s32.totalorder %s46, 0
      %p340 = por %p338, %p339
      %p341 = scmp.ne.s32.totalorder %s329, %s330
      %p342 = scmp.eq.s32.totalorder %s47, 1
      %p343 = por %p341, %p342
      %p345 = scmp.ne.s32.totalorder %s330, %s344
      %p346 = scmp.eq.s32.totalorder %s47, 0
      %p347 = por %p345, %p346
      %s349 = sadd.s32 %s348, 1
      %p352 = scmp.eq.s32.totalorder %s41, 1
      %p353 = scmp.ne.s32.totalorder %s348, %s350
      %p354 = scmp.eq.s32.totalorder %s41, 0
      %p355 = por %p353, %p354
      %p356 = scmp.ne.s32.totalorder %s348, %s350
      %p357 = scmp.eq.s32.totalorder %s46, 1
      %p358 = por %p356, %p357
      %p359 = scmp.ne.s32.totalorder %s350, %s351
      %p360 = scmp.eq.s32.totalorder %s46, 0
      %p361 = por %p359, %p360
      %p362 = scmp.ne.s32.totalorder %s350, %s351
      %p363 = scmp.eq.s32.totalorder %s47, 1
      %p364 = por %p362, %p363
      %p366 = scmp.ne.s32.totalorder %s351, %s365
      %p367 = scmp.eq.s32.totalorder %s47, 0
      %p368 = por %p366, %p367
      %s370 = sadd.s32 %s369, 1
      %p373 = scmp.eq.s32.totalorder %s41, 1
      %p374 = scmp.ne.s32.totalorder %s369, %s371
      %p375 = scmp.eq.s32.totalorder %s41, 0
      %p376 = por %p374, %p375
      %p377 = scmp.ne.s32.totalorder %s369, %s371
      %p378 = scmp.eq.s32.totalorder %s46, 1
      %p379 = por %p377, %p378
      %p380 = scmp.ne.s32.totalorder %s371, %s372
      %p381 = scmp.eq.s32.totalorder %s46, 0
      %p382 = por %p380, %p381
      %p383 = scmp.ne.s32.totalorder %s371, %s372
      %p384 = scmp.eq.s32.totalorder %s47, 1
      %p385 = por %p383, %p384
      %p387 = scmp.ne.s32.totalorder %s372, %s386
      %p388 = scmp.eq.s32.totalorder %s47, 0
      %p389 = por %p387, %p388
      %s391 = sadd.s32 %s390, 1
      %p394 = scmp.eq.s32.totalorder %s41, 1
      %p395 = scmp.ne.s32.totalorder %s390, %s392
      %p396 = scmp.eq.s32.totalorder %s41, 0
      %p397 = por %p395, %p396
      %p398 = scmp.ne.s32.totalorder %s390, %s392
      %p399 = scmp.eq.s32.totalorder %s46, 1
      %p400 = por %p398, %p399
      %p401 = scmp.ne.s32.totalorder %s392, %s393
      %p402 = scmp.eq.s32.totalorder %s46, 0
      %p403 = por %p401, %p402
      %p404 = scmp.ne.s32.totalorder %s392, %s393
      %p405 = scmp.eq.s32.totalorder %s47, 1
      %p406 = por %p404, %p405
      %p408 = scmp.ne.s32.totalorder %s393, %s407
      %p409 = scmp.eq.s32.totalorder %s47, 0
      %p410 = por %p408, %p409
      %s412 = sadd.s32 %s411, 1
      %p415 = scmp.eq.s32.totalorder %s41, 1
      %p416 = scmp.ne.s32.totalorder %s411, %s413
      %p417 = scmp.eq.s32.totalorder %s41, 0
      %p418 = por %p416, %p417
      %p419 = scmp.ne.s32.totalorder %s411, %s413
      %p420 = scmp.eq.s32.totalorder %s46, 1
      %p421 = por %p419, %p420
      %p422 = scmp.ne.s32.totalorder %s413, %s414
      %p423 = scmp.eq.s32.totalorder %s46, 0
      %p424 = por %p422, %p423
      %p425 = scmp.ne.s32.totalorder %s413, %s414
      %p426 = scmp.eq.s32.totalorder %s47, 1
      %p427 = por %p425, %p426
      %p429 = scmp.ne.s32.totalorder %s414, %s428
      %p430 = scmp.eq.s32.totalorder %s47, 0
      %p431 = por %p429, %p430
      %s433 = sadd.s32 %s432, 1
      %p436 = scmp.eq.s32.totalorder %s41, 1
      %p437 = scmp.ne.s32.totalorder %s432, %s434
      %p438 = scmp.eq.s32.totalorder %s41, 0
      %p439 = por %p437, %p438
      %p440 = scmp.ne.s32.totalorder %s432, %s434
      %p441 = scmp.eq.s32.totalorder %s46, 1
      %p442 = por %p440, %p441
      %p443 = scmp.ne.s32.totalorder %s434, %s435
      %p444 = scmp.eq.s32.totalorder %s46, 0
      %p445 = por %p443, %p444
      %p446 = scmp.ne.s32.totalorder %s434, %s435
      %p447 = scmp.eq.s32.totalorder %s47, 1
      %p448 = por %p446, %p447
      %p450 = scmp.ne.s32.totalorder %s435, %s449
      %p451 = scmp.eq.s32.totalorder %s47, 0
      %p452 = por %p450, %p451
      %s454 = sadd.s32 %s453, 1
      %p457 = scmp.eq.s32.totalorder %s41, 1
      %p458 = scmp.ne.s32.totalorder %s453, %s455
      %p459 = scmp.eq.s32.totalorder %s41, 0
      %p460 = por %p458, %p459
      %p461 = scmp.ne.s32.totalorder %s453, %s455
      %p462 = scmp.eq.s32.totalorder %s46, 1
      %p463 = por %p461, %p462
      %p464 = scmp.ne.s32.totalorder %s455, %s456
      %p465 = scmp.eq.s32.totalorder %s46, 0
      %p466 = por %p464, %p465
      %p467 = scmp.ne.s32.totalorder %s455, %s456
      %p468 = scmp.eq.s32.totalorder %s47, 1
      %p469 = por %p467, %p468
      %p471 = scmp.ne.s32.totalorder %s456, %s470
      %p472 = scmp.eq.s32.totalorder %s47, 0
      %p473 = por %p471, %p472
      %s475 = sadd.s32 %s474, 1
      %p478 = scmp.eq.s32.totalorder %s41, 1
      %p479 = scmp.ne.s32.totalorder %s474, %s476
      %p480 = scmp.eq.s32.totalorder %s41, 0
      %p481 = por %p479, %p480
      %p482 = scmp.ne.s32.totalorder %s474, %s476
      %p483 = scmp.eq.s32.totalorder %s46, 1
      %p484 = por %p482, %p483
      %p485 = scmp.ne.s32.totalorder %s476, %s477
      %p486 = scmp.eq.s32.totalorder %s46, 0
      %p487 = por %p485, %p486
      %p488 = scmp.ne.s32.totalorder %s476, %s477
      %p489 = scmp.eq.s32.totalorder %s47, 1
      %p490 = por %p488, %p489
      %p492 = scmp.ne.s32.totalorder %s477, %s491
      %p493 = scmp.eq.s32.totalorder %s47, 0
      %p494 = por %p492, %p493
      %s495 = ssub.s32 %s41, %s48
      %p496 = scmp.eq.s32.totalorder %s495, 0
      %s498 = sadd.s32 %s497, 1
      %s499 = scalar_select %p496, %s497, %s498
      %p502 = pneg %p496
      %p503 = scmp.eq.s32.totalorder %s41, 1
      %p504 = por %p502, %p503
      %p505 = scmp.ne.s32.totalorder %s497, %s500
      %p506 = scmp.eq.s32.totalorder %s41, 0
      %p507 = por %p505, %p506
      %p508 = scmp.ne.s32.totalorder %s497, %s500
      %p509 = scmp.eq.s32.totalorder %s46, 1
      %p510 = por %p508, %p509
      %p511 = scmp.ne.s32.totalorder %s500, %s501
      %p512 = scmp.eq.s32.totalorder %s46, 0
      %p513 = por %p511, %p512
      %p514 = scmp.ne.s32.totalorder %s500, %s501
      %p515 = scmp.eq.s32.totalorder %s47, 1
      %p516 = por %p514, %p515
      %p518 = scmp.ne.s32.totalorder %s501, %s517
      %p519 = scmp.eq.s32.totalorder %s47, 0
      %p520 = por %p518, %p519
      %s521 = ssub.s32 %s41, %s48
      %p522 = scmp.eq.s32.totalorder %s521, 0
      %s524 = sadd.s32 %s523, 1
      %s525 = scalar_select %p522, %s523, %s524
      %p528 = pneg %p522
      %p529 = scmp.eq.s32.totalorder %s41, 1
      %p530 = por %p528, %p529
      %p531 = scmp.ne.s32.totalorder %s523, %s526
      %p532 = scmp.eq.s32.totalorder %s41, 0
      %p533 = por %p531, %p532
      %p534 = scmp.ne.s32.totalorder %s523, %s526
      %p535 = scmp.eq.s32.totalorder %s46, 1
      %p536 = por %p534, %p535
      %p537 = scmp.ne.s32.totalorder %s526, %s527
      %p538 = scmp.eq.s32.totalorder %s46, 0
      %p539 = por %p537, %p538
      %p540 = scmp.ne.s32.totalorder %s526, %s527
      %p541 = scmp.eq.s32.totalorder %s47, 1
      %p542 = por %p540, %p541
      %p544 = scmp.ne.s32.totalorder %s527, %s543
      %p545 = scmp.eq.s32.totalorder %s47, 0
      %p546 = por %p544, %p545
      %p547 = scmp.le.s32.totalorder 1, %s41
      %p548 = scmp.lt.s32.totalorder %s41, 3
      %p549 = pnand %p547, %p548
      %p550 = pneg %p549
      // Predicated region
      $region9: #{tpu_custom_call.1} parent=5 // pred_check
        _
      $region10: #{tpu_custom_call.1} parent=5 // pred_check_branch
        %552 = sbr.rel (%p549) target = $region12
      $region11: #{tpu_custom_call.1} parent=5 // pred_region
        %s553 = ssub.s32 %s41, 1
        // Predicated region
        $region13: #{tpu_custom_call.1} parent=11 // pred_check
          %p554 = pneg %p88
        $region14: #{tpu_custom_call.1} parent=11 // pred_check_branch
          %556 = sbr.rel (%p554) target = $region16
        $region15: #{tpu_custom_call.1} parent=11 // pred_region
          %s558 = ssub.s32 16384, 16384
          %559 = vsyncadd [#allocation6], %s558
          %s560 = sshll.u32 [#allocation5], 4
          %s561 = int_to_ptr.vmem [resolvable:$true] %s560
          %566 = dma.hbm_to_vmem [thread:$0]  %s1, 16384, %s561, [#allocation6], 128, 128, 8
        $region16: #{tpu_custom_call.1} parent=11 // pred_fallthru
          _
        // Predicated region
        $region17: #{tpu_custom_call.1} parent=11 // pred_check
          %p567 = pneg %p109
        $region18: #{tpu_custom_call.1} parent=11 // pred_check_branch
          %569 = sbr.rel (%p567) target = $region20
        $region19: #{tpu_custom_call.1} parent=11 // pred_region
          _
        $region20: #{tpu_custom_call.1} parent=11 // pred_fallthru
          _
        // Predicated region
        $region21: #{tpu_custom_call.1} parent=11 // pred_check
          %p570 = pneg %p130
        $region22: #{tpu_custom_call.1} parent=11 // pred_check_branch
          %572 = sbr.rel (%p570) target = $region24
        $region23: #{tpu_custom_call.1} parent=11 // pred_region
          %s574 = ssub.s32 2048, 2048
          %575 = vsyncadd [#allocation6], %s574
          %s576 = sshll.u32 [#allocation7], 4
          %s577 = int_to_ptr.vmem [resolvable:$true] %s576
          %582 = dma.hbm_to_vmem [thread:$0]  %s3, 2048, %s577, [#allocation6], 128, 128, 8
        $region24: #{tpu_custom_call.1} parent=11 // pred_fallthru
          _
        // Predicated region
        $region25: #{tpu_custom_call.1} parent=11 // pred_check
          %p583 = pneg %p151
        $region26: #{tpu_custom_call.1} parent=11 // pred_check_branch
          %585 = sbr.rel (%p583) target = $region28
        $region27: #{tpu_custom_call.1} parent=11 // pred_region
          _
        $region28: #{tpu_custom_call.1} parent=11 // pred_fallthru
          _
        // Predicated region
        $region29: #{tpu_custom_call.1} parent=11 // pred_check
          %p586 = pneg %p172
        $region30: #{tpu_custom_call.1} parent=11 // pred_check_branch
          %588 = sbr.rel (%p586) target = $region32
        $region31: #{tpu_custom_call.1} parent=11 // pred_region
          _
        $region32: #{tpu_custom_call.1} parent=11 // pred_fallthru
          _
        // Predicated region
        $region33: #{tpu_custom_call.1} parent=11 // pred_check
          %p589 = pneg %p193
        $region34: #{tpu_custom_call.1} parent=11 // pred_check_branch
          %591 = sbr.rel (%p589) target = $region36
        $region35: #{tpu_custom_call.1} parent=11 // pred_region
          _
        $region36: #{tpu_custom_call.1} parent=11 // pred_fallthru
          _
        // Predicated region
        $region37: #{tpu_custom_call.1} parent=11 // pred_check
          %p592 = pneg %p214
        $region38: #{tpu_custom_call.1} parent=11 // pred_check_branch
          %594 = sbr.rel (%p592) target = $region40
        $region39: #{tpu_custom_call.1} parent=11 // pred_region
          %s596 = ssub.s32 2048, 2048
          %597 = vsyncadd [#allocation9], %s596
          %s598 = sshll.u32 [#allocation8], 4
          %s599 = int_to_ptr.vmem [resolvable:$true] %s598
          %604 = dma.hbm_to_vmem [thread:$0]  %s7, 2048, %s599, [#allocation9], 128, 128, 8
        $region40: #{tpu_custom_call.1} parent=11 // pred_fallthru
          _
        // Predicated region
        $region41: #{tpu_custom_call.1} parent=11 // pred_check
          %p605 = pneg %p235
        $region42: #{tpu_custom_call.1} parent=11 // pred_check_branch
          %607 = sbr.rel (%p605) target = $region44
        $region43: #{tpu_custom_call.1} parent=11 // pred_region
          _
        $region44: #{tpu_custom_call.1} parent=11 // pred_fallthru
          _
        // Predicated region
        $region45: #{tpu_custom_call.1} parent=11 // pred_check
          %p608 = pneg %p256
        $region46: #{tpu_custom_call.1} parent=11 // pred_check_branch
          %610 = sbr.rel (%p608) target = $region48
        $region47: #{tpu_custom_call.1} parent=11 // pred_region
          _
        $region48: #{tpu_custom_call.1} parent=11 // pred_fallthru
          _
        // Predicated region
        $region49: #{tpu_custom_call.1} parent=11 // pred_check
          %p611 = pneg %p277
        $region50: #{tpu_custom_call.1} parent=11 // pred_check_branch
          %613 = sbr.rel (%p611) target = $region52
        $region51: #{tpu_custom_call.1} parent=11 // pred_region
          _
        $region52: #{tpu_custom_call.1} parent=11 // pred_fallthru
          _
        // Predicated region
        $region53: #{tpu_custom_call.1} parent=11 // pred_check
          %p614 = pneg %p298
        $region54: #{tpu_custom_call.1} parent=11 // pred_check_branch
          %616 = sbr.rel (%p614) target = $region56
        $region55: #{tpu_custom_call.1} parent=11 // pred_region
          %s618 = ssub.s32 2048, 2048
          %619 = vsyncadd [#allocation9], %s618
          %s620 = sshll.u32 [#allocation10], 4
          %s621 = int_to_ptr.vmem [resolvable:$true] %s620
          %626 = dma.hbm_to_vmem [thread:$0]  %s11, 2048, %s621, [#allocation9], 128, 128, 8
        $region56: #{tpu_custom_call.1} parent=11 // pred_fallthru
          _
        // Predicated region
        $region57: #{tpu_custom_call.1} parent=11 // pred_check
          %p627 = pneg %p319
        $region58: #{tpu_custom_call.1} parent=11 // pred_check_branch
          %629 = sbr.rel (%p627) target = $region60
        $region59: #{tpu_custom_call.1} parent=11 // pred_region
          _
        $region60: #{tpu_custom_call.1} parent=11 // pred_fallthru
          _
        // Predicated region
        $region61: #{tpu_custom_call.1} parent=11 // pred_check
          %p630 = pneg %p340
        $region62: #{tpu_custom_call.1} parent=11 // pred_check_branch
          %632 = sbr.rel (%p630) target = $region64
        $region63: #{tpu_custom_call.1} parent=11 // pred_region
          _
        $region64: #{tpu_custom_call.1} parent=11 // pred_fallthru
          _
        // Predicated region
        $region65: #{tpu_custom_call.1} parent=11 // pred_check
          %p633 = pneg %p361
        $region66: #{tpu_custom_call.1} parent=11 // pred_check_branch
          %635 = sbr.rel (%p633) target = $region68
        $region67: #{tpu_custom_call.1} parent=11 // pred_region
          _
        $region68: #{tpu_custom_call.1} parent=11 // pred_fallthru
          _
        // Predicated region
        $region69: #{tpu_custom_call.1} parent=11 // pred_check
          %p636 = pneg %p382
        $region70: #{tpu_custom_call.1} parent=11 // pred_check_branch
          %638 = sbr.rel (%p636) target = $region72
        $region71: #{tpu_custom_call.1} parent=11 // pred_region
          %s640 = ssub.s32 2048, 2048
          %641 = vsyncadd [#allocation12], %s640
          %s642 = sshll.u32 [#allocation11], 4
          %s643 = int_to_ptr.vmem [resolvable:$true] %s642
          %648 = dma.hbm_to_vmem [thread:$0]  %s15, 2048, %s643, [#allocation12], 128, 128, 8
        $region72: #{tpu_custom_call.1} parent=11 // pred_fallthru
          _
        // Predicated region
        $region73: #{tpu_custom_call.1} parent=11 // pred_check
          %p649 = pneg %p403
        $region74: #{tpu_custom_call.1} parent=11 // pred_check_branch
          %651 = sbr.rel (%p649) target = $region76
        $region75: #{tpu_custom_call.1} parent=11 // pred_region
          _
        $region76: #{tpu_custom_call.1} parent=11 // pred_fallthru
          _
        // Predicated region
        $region77: #{tpu_custom_call.1} parent=11 // pred_check
          %p652 = pneg %p424
        $region78: #{tpu_custom_call.1} parent=11 // pred_check_branch
          %654 = sbr.rel (%p652) target = $region80
        $region79: #{tpu_custom_call.1} parent=11 // pred_region
          _
        $region80: #{tpu_custom_call.1} parent=11 // pred_fallthru
          _
        // Predicated region
        $region81: #{tpu_custom_call.1} parent=11 // pred_check
          %p655 = pneg %p445
        $region82: #{tpu_custom_call.1} parent=11 // pred_check_branch
          %657 = sbr.rel (%p655) target = $region84
        $region83: #{tpu_custom_call.1} parent=11 // pred_region
          _
        $region84: #{tpu_custom_call.1} parent=11 // pred_fallthru
          _
        // Predicated region
        $region85: #{tpu_custom_call.1} parent=11 // pred_check
          %p658 = pneg %p466
        $region86: #{tpu_custom_call.1} parent=11 // pred_check_branch
          %660 = sbr.rel (%p658) target = $region88
        $region87: #{tpu_custom_call.1} parent=11 // pred_region
          %s662 = ssub.s32 2048, 2048
          %663 = vsyncadd [#allocation12], %s662
          %s664 = sshll.u32 [#allocation13], 4
          %s665 = int_to_ptr.vmem [resolvable:$true] %s664
          %670 = dma.hbm_to_vmem [thread:$0]  %s19, 2048, %s665, [#allocation12], 128, 128, 8
        $region88: #{tpu_custom_call.1} parent=11 // pred_fallthru
          _
        // Predicated region
        $region89: #{tpu_custom_call.1} parent=11 // pred_check
          %p671 = pneg %p487
        $region90: #{tpu_custom_call.1} parent=11 // pred_check_branch
          %673 = sbr.rel (%p671) target = $region92
        $region91: #{tpu_custom_call.1} parent=11 // pred_region
          _
        $region92: #{tpu_custom_call.1} parent=11 // pred_fallthru
          _
      $region12: #{tpu_custom_call.1} parent=5 // pred_fallthru
        _
      %p674 = scmp.lt.s32.totalorder %s41, 2
      // Predicated region
      $region93: #{tpu_custom_call.1} parent=5 // pred_check
        %p675 = pneg %p674
      $region94: #{tpu_custom_call.1} parent=5 // pred_check_branch
        %677 = sbr.rel (%p675) target = $region96
      $region95: #{tpu_custom_call.1} parent=5 // pred_region
        // Predicated region
        $region97: #{tpu_custom_call.1} parent=95 // pred_check
          %p678 = pneg %p61
        $region98: #{tpu_custom_call.1} parent=95 // pred_check_branch
          %680 = sbr.rel (%p678) target = $region100
        $region99: #{tpu_custom_call.1} parent=95 // pred_region
          %s681 = sand.u32 %s51, 1
          %s682 = scalar_lea.sflag [#allocation3], %s681
          %s683 = sand.u32 %s51, 1
          %s684 = smul.addr %s683, 64
          %s685 = scalar_lea.vmem [#allocation2], %s684
          %s687 = ssub.s32 1024, 1024
          %688 = vsyncadd %s682, %s687
          %s689 = smul.addr %s41, 8
          %s690 = smul.addr %s689, 128
          %s691 = scalar_lea.hbm %s0, %s690
          %s693 = sshll.u32 %s685, 4
          %s694 = int_to_ptr.vmem [resolvable:$true] %s693
          %696 = dma.hbm_to_vmem [thread:$0]  %s691, 1024, %s694, %s682
        $region100: #{tpu_custom_call.1} parent=95 // pred_fallthru
          _
      $region96: #{tpu_custom_call.1} parent=5 // pred_fallthru
        _
      %p697 = scmp.le.s32.totalorder 1, %s41
      %p698 = scmp.lt.s32.totalorder %s41, 3
      %p699 = pnand %p697, %p698
      %p700 = pneg %p699
      // Predicated region
      $region101: #{tpu_custom_call.1} parent=5 // pred_check
        _
      $region102: #{tpu_custom_call.1} parent=5 // pred_check_branch
        %702 = sbr.rel (%p699) target = $region104
      $region103: #{tpu_custom_call.1} parent=5 // pred_region
        %s703 = ssub.s32 %s41, 1
        %s704 = sand.u32 %s54, 1
        %s705 = scalar_lea.sflag [#allocation3], %s704
        %s706 = sand.u32 %s54, 1
        %s707 = smul.addr %s706, 64
        %s708 = scalar_lea.vmem [#allocation2], %s707
        // Predicated region
        $region105: #{tpu_custom_call.1} parent=103 // pred_check
          %p709 = pneg %p67
        $region106: #{tpu_custom_call.1} parent=103 // pred_check_branch
          %711 = sbr.rel (%p709) target = $region108
        $region107: #{tpu_custom_call.1} parent=103 // pred_region
          %712 = dma.done %s705, 1024
        $region108: #{tpu_custom_call.1} parent=103 // pred_fallthru
          _
        // Predicated region
        $region109: #{tpu_custom_call.1} parent=103 // pred_check
          %p713 = pneg %p88
        $region110: #{tpu_custom_call.1} parent=103 // pred_check_branch
          %715 = sbr.rel (%p713) target = $region112
        $region111: #{tpu_custom_call.1} parent=103 // pred_region
          %716 = dma.done [#allocation6], 16384
        $region112: #{tpu_custom_call.1} parent=103 // pred_fallthru
          _
        // Predicated region
        $region113: #{tpu_custom_call.1} parent=103 // pred_check
          %p717 = pneg %p130
        $region114: #{tpu_custom_call.1} parent=103 // pred_check_branch
          %719 = sbr.rel (%p717) target = $region116
        $region115: #{tpu_custom_call.1} parent=103 // pred_region
          %720 = dma.done [#allocation6], 2048
        $region116: #{tpu_custom_call.1} parent=103 // pred_fallthru
          _
        // Predicated region
        $region117: #{tpu_custom_call.1} parent=103 // pred_check
          %p721 = pneg %p214
        $region118: #{tpu_custom_call.1} parent=103 // pred_check_branch
          %723 = sbr.rel (%p721) target = $region120
        $region119: #{tpu_custom_call.1} parent=103 // pred_region
          %724 = dma.done [#allocation9], 2048
        $region120: #{tpu_custom_call.1} parent=103 // pred_fallthru
          _
        // Predicated region
        $region121: #{tpu_custom_call.1} parent=103 // pred_check
          %p725 = pneg %p298
        $region122: #{tpu_custom_call.1} parent=103 // pred_check_branch
          %727 = sbr.rel (%p725) target = $region124
        $region123: #{tpu_custom_call.1} parent=103 // pred_region
          %728 = dma.done [#allocation9], 2048
        $region124: #{tpu_custom_call.1} parent=103 // pred_fallthru
          _
        // Predicated region
        $region125: #{tpu_custom_call.1} parent=103 // pred_check
          %p729 = pneg %p382
        $region126: #{tpu_custom_call.1} parent=103 // pred_check_branch
          %731 = sbr.rel (%p729) target = $region128
        $region127: #{tpu_custom_call.1} parent=103 // pred_region
          %732 = dma.done [#allocation12], 2048
        $region128: #{tpu_custom_call.1} parent=103 // pred_fallthru
          _
        // Predicated region
        $region129: #{tpu_custom_call.1} parent=103 // pred_check
          %p733 = pneg %p466
        $region130: #{tpu_custom_call.1} parent=103 // pred_check_branch
          %735 = sbr.rel (%p733) target = $region132
        $region131: #{tpu_custom_call.1} parent=103 // pred_region
          %736 = dma.done [#allocation12], 2048
        $region132: #{tpu_custom_call.1} parent=103 // pred_fallthru
          _
        %s737 = sand.u32 %s54, 1
        %s738 = scalar_lea.sflag [#allocation3], %s737
        %s739 = sand.u32 %s54, 1
        %s740 = smul.addr %s739, 64
        %s741 = scalar_lea.vmem [#allocation2], %s740
        %p742 = pneg %p67
        %p743 = pneg %p64
        %p744 = pneg %p88
        %p745 = pneg %p85
        %p746 = pneg %p109
        %p747 = pneg %p106
        %p748 = pneg %p130
        %p749 = pneg %p127
        %p750 = pneg %p151
        %p751 = pneg %p148
        %p752 = pneg %p172
        %p753 = pneg %p169
        %p754 = pneg %p193
        %p755 = pneg %p190
        %p756 = pneg %p214
        %p757 = pneg %p211
        %p758 = pneg %p235
        %p759 = pneg %p232
        %p760 = pneg %p256
        %p761 = pneg %p253
        %p762 = pneg %p277
        %p763 = pneg %p274
        %p764 = pneg %p298
        %p765 = pneg %p295
        %p766 = pneg %p319
        %p767 = pneg %p316
        %p768 = pneg %p340
        %p769 = pneg %p337
        %p770 = pneg %p361
        %p771 = pneg %p358
        %p772 = pneg %p382
        %p773 = pneg %p379
        %p774 = pneg %p403
        %p775 = pneg %p400
        %p776 = pneg %p424
        %p777 = pneg %p421
        %p778 = pneg %p445
        %p779 = pneg %p442
        %p780 = pneg %p466
        %p781 = pneg %p463
        %p782 = pneg %p487
        %p783 = pneg %p484
        %p784 = pneg %p513
        %p785 = pneg %p510
        %s786 = sand.u32 %s500, 1
        %s787 = scalar_lea.sflag [#allocation4], %s786
        %s788 = sand.u32 %s500, 1
        %s789 = smul.addr %s788, 8
        %s790 = scalar_lea.vmem [#allocation14], %s789
        %p791 = pneg %p539
        %p792 = pneg %p536
        %s793 = sand.u32 %s526, 1
        %s794 = scalar_lea.sflag [#allocation16], %s793
        %s795 = sand.u32 %s526, 1
        %s796 = smul.addr %s795, 8
        %s797 = scalar_lea.vmem [#allocation15], %s796
        %v798 = vld [vmem:[%s708] sm:$0xff]
        %v799 = vld [vmem:[%s708 + $0x8] sm:$0xff]
        %v800 = vld [vmem:[%s708 + $0x10] sm:$0xff]
        %v801 = vld [vmem:[%s708 + $0x18] sm:$0xff]
        %v802 = vld [vmem:[%s708 + $0x20] sm:$0xff]
        %v803 = vld [vmem:[%s708 + $0x28] sm:$0xff]
        %v804 = vld [vmem:[%s708 + $0x30] sm:$0xff]
        %v805 = vld [vmem:[%s708 + $0x38] sm:$0xff]
        %v806 = vlaneseq
        %v807 = vshrl.u32 %v806, 7
        %vm808 = vcmp.lt.s32.totalorder %v807, 2
        %v809 = vsel %vm808, 1, 0
        %v810 = vcvt.s32.f32 %v809
        %v811 = vld [vmem:[#allocation5] sm:$0xff]
        %v812 = vld [vmem:[#allocation5 + $0x8] sm:$0xff]
        %v813 = vld [vmem:[#allocation5 + $0x10] sm:$0xff]
        %v814 = vld [vmem:[#allocation5 + $0x18] sm:$0xff]
        %v815 = vld [vmem:[#allocation5 + $0x20] sm:$0xff]
        %v816 = vld [vmem:[#allocation5 + $0x28] sm:$0xff]
        %v817 = vld [vmem:[#allocation5 + $0x30] sm:$0xff]
        %v818 = vld [vmem:[#allocation5 + $0x38] sm:$0xff]
        %v819 = vld [vmem:[#allocation5 + $0x40] sm:$0xff]
        %v820 = vld [vmem:[#allocation5 + $0x48] sm:$0xff]
        %v821 = vld [vmem:[#allocation5 + $0x50] sm:$0xff]
        %v822 = vld [vmem:[#allocation5 + $0x58] sm:$0xff]
        %v823 = vld [vmem:[#allocation5 + $0x60] sm:$0xff]
        %v824 = vld [vmem:[#allocation5 + $0x68] sm:$0xff]
        %v825 = vld [vmem:[#allocation5 + $0x70] sm:$0xff]
        %v826 = vld [vmem:[#allocation5 + $0x78] sm:$0xff]
        %v827 = vld [vmem:[#allocation5 + $0x80] sm:$0xff]
        %v828 = vld [vmem:[#allocation5 + $0x88] sm:$0xff]
        %v829 = vld [vmem:[#allocation5 + $0x90] sm:$0xff]
        %v830 = vld [vmem:[#allocation5 + $0x98] sm:$0xff]
        %v831 = vld [vmem:[#allocation5 + $0xa0] sm:$0xff]
        %v832 = vld [vmem:[#allocation5 + $0xa8] sm:$0xff]
        %v833 = vld [vmem:[#allocation5 + $0xb0] sm:$0xff]
        %v834 = vld [vmem:[#allocation5 + $0xb8] sm:$0xff]
        %v835 = vld [vmem:[#allocation5 + $0xc0] sm:$0xff]
        %v836 = vld [vmem:[#allocation5 + $0xc8] sm:$0xff]
        %v837 = vld [vmem:[#allocation5 + $0xd0] sm:$0xff]
        %v838 = vld [vmem:[#allocation5 + $0xd8] sm:$0xff]
        %v839 = vld [vmem:[#allocation5 + $0xe0] sm:$0xff]
        %v840 = vld [vmem:[#allocation5 + $0xe8] sm:$0xff]
        %v841 = vld [vmem:[#allocation5 + $0xf0] sm:$0xff]
        %v842 = vld [vmem:[#allocation5 + $0xf8] sm:$0xff]
        %v843 = vld [vmem:[#allocation5 + $0x100] sm:$0xff]
        %v844 = vld [vmem:[#allocation5 + $0x108] sm:$0xff]
        %v845 = vld [vmem:[#allocation5 + $0x110] sm:$0xff]
        %v846 = vld [vmem:[#allocation5 + $0x118] sm:$0xff]
        %v847 = vld [vmem:[#allocation5 + $0x120] sm:$0xff]
        %v848 = vld [vmem:[#allocation5 + $0x128] sm:$0xff]
        %v849 = vld [vmem:[#allocation5 + $0x130] sm:$0xff]
        %v850 = vld [vmem:[#allocation5 + $0x138] sm:$0xff]
        %v851 = vld [vmem:[#allocation5 + $0x140] sm:$0xff]
        %v852 = vld [vmem:[#allocation5 + $0x148] sm:$0xff]
        %v853 = vld [vmem:[#allocation5 + $0x150] sm:$0xff]
        %v854 = vld [vmem:[#allocation5 + $0x158] sm:$0xff]
        %v855 = vld [vmem:[#allocation5 + $0x160] sm:$0xff]
        %v856 = vld [vmem:[#allocation5 + $0x168] sm:$0xff]
        %v857 = vld [vmem:[#allocation5 + $0x170] sm:$0xff]
        %v858 = vld [vmem:[#allocation5 + $0x178] sm:$0xff]
        %v859 = vld [vmem:[#allocation5 + $0x180] sm:$0xff]
        %v860 = vld [vmem:[#allocation5 + $0x188] sm:$0xff]
        %v861 = vld [vmem:[#allocation5 + $0x190] sm:$0xff]
        %v862 = vld [vmem:[#allocation5 + $0x198] sm:$0xff]
        %v863 = vld [vmem:[#allocation5 + $0x1a0] sm:$0xff]
        %v864 = vld [vmem:[#allocation5 + $0x1a8] sm:$0xff]
        %v865 = vld [vmem:[#allocation5 + $0x1b0] sm:$0xff]
        %v866 = vld [vmem:[#allocation5 + $0x1b8] sm:$0xff]
        %v867 = vld [vmem:[#allocation5 + $0x1c0] sm:$0xff]
        %v868 = vld [vmem:[#allocation5 + $0x1c8] sm:$0xff]
        %v869 = vld [vmem:[#allocation5 + $0x1d0] sm:$0xff]
        %v870 = vld [vmem:[#allocation5 + $0x1d8] sm:$0xff]
        %v871 = vld [vmem:[#allocation5 + $0x1e0] sm:$0xff]
        %v872 = vld [vmem:[#allocation5 + $0x1e8] sm:$0xff]
        %v873 = vld [vmem:[#allocation5 + $0x1f0] sm:$0xff]
        %v874 = vld [vmem:[#allocation5 + $0x1f8] sm:$0xff]
        %v875 = vld [vmem:[#allocation5 + $0x200] sm:$0xff]
        %v876 = vld [vmem:[#allocation5 + $0x208] sm:$0xff]
        %v877 = vld [vmem:[#allocation5 + $0x210] sm:$0xff]
        %v878 = vld [vmem:[#allocation5 + $0x218] sm:$0xff]
        %v879 = vld [vmem:[#allocation5 + $0x220] sm:$0xff]
        %v880 = vld [vmem:[#allocation5 + $0x228] sm:$0xff]
        %v881 = vld [vmem:[#allocation5 + $0x230] sm:$0xff]
        %v882 = vld [vmem:[#allocation5 + $0x238] sm:$0xff]
        %v883 = vld [vmem:[#allocation5 + $0x240] sm:$0xff]
        %v884 = vld [vmem:[#allocation5 + $0x248] sm:$0xff]
        %v885 = vld [vmem:[#allocation5 + $0x250] sm:$0xff]
        %v886 = vld [vmem:[#allocation5 + $0x258] sm:$0xff]
        %v887 = vld [vmem:[#allocation5 + $0x260] sm:$0xff]
        %v888 = vld [vmem:[#allocation5 + $0x268] sm:$0xff]
        %v889 = vld [vmem:[#allocation5 + $0x270] sm:$0xff]
        %v890 = vld [vmem:[#allocation5 + $0x278] sm:$0xff]
        %v891 = vld [vmem:[#allocation5 + $0x280] sm:$0xff]
        %v892 = vld [vmem:[#allocation5 + $0x288] sm:$0xff]
        %v893 = vld [vmem:[#allocation5 + $0x290] sm:$0xff]
        %v894 = vld [vmem:[#allocation5 + $0x298] sm:$0xff]
        %v895 = vld [vmem:[#allocation5 + $0x2a0] sm:$0xff]
        %v896 = vld [vmem:[#allocation5 + $0x2a8] sm:$0xff]
        %v897 = vld [vmem:[#allocation5 + $0x2b0] sm:$0xff]
        %v898 = vld [vmem:[#allocation5 + $0x2b8] sm:$0xff]
        %v899 = vld [vmem:[#allocation5 + $0x2c0] sm:$0xff]
        %v900 = vld [vmem:[#allocation5 + $0x2c8] sm:$0xff]
        %v901 = vld [vmem:[#allocation5 + $0x2d0] sm:$0xff]
        %v902 = vld [vmem:[#allocation5 + $0x2d8] sm:$0xff]
        %v903 = vld [vmem:[#allocation5 + $0x2e0] sm:$0xff]
        %v904 = vld [vmem:[#allocation5 + $0x2e8] sm:$0xff]
        %v905 = vld [vmem:[#allocation5 + $0x2f0] sm:$0xff]
        %v906 = vld [vmem:[#allocation5 + $0x2f8] sm:$0xff]
        %v907 = vld [vmem:[#allocation5 + $0x300] sm:$0xff]
        %v908 = vld [vmem:[#allocation5 + $0x308] sm:$0xff]
        %v909 = vld [vmem:[#allocation5 + $0x310] sm:$0xff]
        %v910 = vld [vmem:[#allocation5 + $0x318] sm:$0xff]
        %v911 = vld [vmem:[#allocation5 + $0x320] sm:$0xff]
        %v912 = vld [vmem:[#allocation5 + $0x328] sm:$0xff]
        %v913 = vld [vmem:[#allocation5 + $0x330] sm:$0xff]
        %v914 = vld [vmem:[#allocation5 + $0x338] sm:$0xff]
        %v915 = vld [vmem:[#allocation5 + $0x340] sm:$0xff]
        %v916 = vld [vmem:[#allocation5 + $0x348] sm:$0xff]
        %v917 = vld [vmem:[#allocation5 + $0x350] sm:$0xff]
        %v918 = vld [vmem:[#allocation5 + $0x358] sm:$0xff]
        %v919 = vld [vmem:[#allocation5 + $0x360] sm:$0xff]
        %v920 = vld [vmem:[#allocation5 + $0x368] sm:$0xff]
        %v921 = vld [vmem:[#allocation5 + $0x370] sm:$0xff]
        %v922 = vld [vmem:[#allocation5 + $0x378] sm:$0xff]
        %v923 = vld [vmem:[#allocation5 + $0x380] sm:$0xff]
        %v924 = vld [vmem:[#allocation5 + $0x388] sm:$0xff]
        %v925 = vld [vmem:[#allocation5 + $0x390] sm:$0xff]
        %v926 = vld [vmem:[#allocation5 + $0x398] sm:$0xff]
        %v927 = vld [vmem:[#allocation5 + $0x3a0] sm:$0xff]
        %v928 = vld [vmem:[#allocation5 + $0x3a8] sm:$0xff]
        %v929 = vld [vmem:[#allocation5 + $0x3b0] sm:$0xff]
        %v930 = vld [vmem:[#allocation5 + $0x3b8] sm:$0xff]
        %v931 = vld [vmem:[#allocation5 + $0x3c0] sm:$0xff]
        %v932 = vld [vmem:[#allocation5 + $0x3c8] sm:$0xff]
        %v933 = vld [vmem:[#allocation5 + $0x3d0] sm:$0xff]
        %v934 = vld [vmem:[#allocation5 + $0x3d8] sm:$0xff]
        %v935 = vld [vmem:[#allocation5 + $0x3e0] sm:$0xff]
        %v936 = vld [vmem:[#allocation5 + $0x3e8] sm:$0xff]
        %v937 = vld [vmem:[#allocation5 + $0x3f0] sm:$0xff]
        %v938 = vld [vmem:[#allocation5 + $0x3f8] sm:$0xff]
        %v939 = vld [vmem:[%s2] sm:$0x1]
        %v941 = vlaneseq
        %v942 = vshrl.u32 %v941, 7
        %v943 = vsub.s32 0, %v942
        %v944 = vrot.slane %v939, %v943
        %946 = vmatprep.subr.mxu0 0.0
        %947 = vmatpush1.msra.mxu0 %v811
        %948 = vmatprep.subr.mxu0 0.0
        %949 = vmatpush1.msra.mxu0 %v812
        %950 = vmatprep.subr.mxu0 0.0
        %951 = vmatpush1.msra.mxu0 %v813
        %952 = vmatprep.subr.mxu0 0.0
        %953 = vmatpush1.msra.mxu0 %v814
        %954 = vmatprep.subr.mxu0 0.0
        %955 = vmatpush1.msra.mxu0 %v815
        %956 = vmatprep.subr.mxu0 0.0
        %957 = vmatpush1.msra.mxu0 %v816
        %958 = vmatprep.subr.mxu0 0.0
        %959 = vmatpush1.msra.mxu0 %v817
        %960 = vmatprep.subr.mxu0 0.0
        %961 = vmatpush1.msra.mxu0 %v818
        %962 = vmatprep.subr.mxu0 0.0
        %963 = vmatpush1.msra.mxu0 %v819
        %964 = vmatprep.subr.mxu0 0.0
        %965 = vmatpush1.msra.mxu0 %v820
        %966 = vmatprep.subr.mxu0 0.0
        %967 = vmatpush1.msra.mxu0 %v821
        %968 = vmatprep.subr.mxu0 0.0
        %969 = vmatpush1.msra.mxu0 %v822
        %970 = vmatprep.subr.mxu0 0.0
        %971 = vmatpush1.msra.mxu0 %v823
        %972 = vmatprep.subr.mxu0 0.0
        %973 = vmatpush1.msra.mxu0 %v824
        %974 = vmatprep.subr.mxu0 0.0
        %975 = vmatpush1.msra.mxu0 %v825
        %976 = vmatprep.subr.mxu0 0.0
        %977 = vmatpush1.msra.mxu0 %v826
        %978 = vmatprep.subr.mxu0 0.0
        %979 = vmatpush1.msra.mxu0 %v827
        %980 = vmatprep.subr.mxu0 0.0
        %981 = vmatpush1.msra.mxu0 %v828
        %982 = vmatprep.subr.mxu0 0.0
        %983 = vmatpush1.msra.mxu0 %v829
        %984 = vmatprep.subr.mxu0 0.0
        %985 = vmatpush1.msra.mxu0 %v830
        %986 = vmatprep.subr.mxu0 0.0
        %987 = vmatpush1.msra.mxu0 %v831
        %988 = vmatprep.subr.mxu0 0.0
        %989 = vmatpush1.msra.mxu0 %v832
        %990 = vmatprep.subr.mxu0 0.0
        %991 = vmatpush1.msra.mxu0 %v833
        %992 = vmatprep.subr.mxu0 0.0
        %993 = vmatpush1.msra.mxu0 %v834
        %994 = vmatprep.subr.mxu0 0.0
        %995 = vmatpush1.msra.mxu0 %v835
        %996 = vmatprep.subr.mxu0 0.0
        %997 = vmatpush1.msra.mxu0 %v836
        %998 = vmatprep.subr.mxu0 0.0
        %999 = vmatpush1.msra.mxu0 %v837
        %1000 = vmatprep.subr.mxu0 0.0
        %1001 = vmatpush1.msra.mxu0 %v838
        %1002 = vmatprep.subr.mxu0 0.0
        %1003 = vmatpush1.msra.mxu0 %v839
        %1004 = vmatprep.subr.mxu0 0.0
        %1005 = vmatpush1.msra.mxu0 %v840
        %1006 = vmatprep.subr.mxu0 0.0
        %1007 = vmatpush1.msra.mxu0 %v841
        %1008 = vmatprep.subr.mxu0 0.0
        %1009 = vmatpush1.msra.mxu0 %v842
        %1010 = vmatprep.mubr.f32.mxu0 %v799
        %1011 = vmatmul.mubr.f32.gmra.mrb[0].mxu0 %v798
        %v1012 = vpop.f32.mrb[0].mxu0
        %v1013 = vadd.f32 %v944, %v1012
        %v1014 = vpop.f32.mrb[0].mxu0
        %1015 = vdwg.mxu0
        %1016 = vmatprep.subr.mxu0 0.0
        %1017 = vmatpush1.msra.mxu0 %v843
        %1018 = vmatprep.subr.mxu0 0.0
        %1019 = vmatpush1.msra.mxu0 %v844
        %1020 = vmatprep.subr.mxu0 0.0
        %1021 = vmatpush1.msra.mxu0 %v845
        %1022 = vmatprep.subr.mxu0 0.0
        %1023 = vmatpush1.msra.mxu0 %v846
        %1024 = vmatprep.subr.mxu0 0.0
        %1025 = vmatpush1.msra.mxu0 %v847
        %1026 = vmatprep.subr.mxu0 0.0
        %1027 = vmatpush1.msra.mxu0 %v848
        %1028 = vmatprep.subr.mxu0 0.0
        %1029 = vmatpush1.msra.mxu0 %v849
        %1030 = vmatprep.subr.mxu0 0.0
        %1031 = vmatpush1.msra.mxu0 %v850
        %1032 = vmatprep.subr.mxu0 0.0
        %1033 = vmatpush1.msra.mxu0 %v851
        %1034 = vmatprep.subr.mxu0 0.0
        %1035 = vmatpush1.msra.mxu0 %v852
        %1036 = vmatprep.subr.mxu0 0.0
        %1037 = vmatpush1.msra.mxu0 %v853
        %1038 = vmatprep.subr.mxu0 0.0
        %1039 = vmatpush1.msra.mxu0 %v854
        %1040 = vmatprep.subr.mxu0 0.0
        %1041 = vmatpush1.msra.mxu0 %v855
        %1042 = vmatprep.subr.mxu0 0.0
        %1043 = vmatpush1.msra.mxu0 %v856
        %1044 = vmatprep.subr.mxu0 0.0
        %1045 = vmatpush1.msra.mxu0 %v857
        %1046 = vmatprep.subr.mxu0 0.0
        %1047 = vmatpush1.msra.mxu0 %v858
        %1048 = vmatprep.subr.mxu0 0.0
        %1049 = vmatpush1.msra.mxu0 %v859
        %1050 = vmatprep.subr.mxu0 0.0
        %1051 = vmatpush1.msra.mxu0 %v860
        %1052 = vmatprep.subr.mxu0 0.0
        %1053 = vmatpush1.msra.mxu0 %v861
        %1054 = vmatprep.subr.mxu0 0.0
        %1055 = vmatpush1.msra.mxu0 %v862
        %1056 = vmatprep.subr.mxu0 0.0
        %1057 = vmatpush1.msra.mxu0 %v863
        %1058 = vmatprep.subr.mxu0 0.0
        %1059 = vmatpush1.msra.mxu0 %v864
        %1060 = vmatprep.subr.mxu0 0.0
        %1061 = vmatpush1.msra.mxu0 %v865
        %1062 = vmatprep.subr.mxu0 0.0
        %1063 = vmatpush1.msra.mxu0 %v866
        %1064 = vmatprep.subr.mxu0 0.0
        %1065 = vmatpush1.msra.mxu0 %v867
        %1066 = vmatprep.subr.mxu0 0.0
        %1067 = vmatpush1.msra.mxu0 %v868
        %1068 = vmatprep.subr.mxu0 0.0
        %1069 = vmatpush1.msra.mxu0 %v869
        %1070 = vmatprep.subr.mxu0 0.0
        %1071 = vmatpush1.msra.mxu0 %v870
        %1072 = vmatprep.subr.mxu0 0.0
        %1073 = vmatpush1.msra.mxu0 %v871
        %1074 = vmatprep.subr.mxu0 0.0
        %1075 = vmatpush1.msra.mxu0 %v872
        %1076 = vmatprep.subr.mxu0 0.0
        %1077 = vmatpush1.msra.mxu0 %v873
        %1078 = vmatprep.subr.mxu0 0.0
        %1079 = vmatpush1.msra.mxu0 %v874
        %1080 = vmatprep.mubr.f32.mxu0 %v801
        %1081 = vmatmul.mubr.f32.gmra.mrb[0].mxu0 %v800
        %v1082 = vpop.f32.mrb[0].mxu0
        %v1083 = vadd.f32 %v1013, %v1082
        %v1084 = vpop.f32.mrb[0].mxu0
        %1085 = vdwg.mxu0
        %1086 = vmatprep.subr.mxu0 0.0
        %1087 = vmatpush1.msra.mxu0 %v875
        %1088 = vmatprep.subr.mxu0 0.0
        %1089 = vmatpush1.msra.mxu0 %v876
        %1090 = vmatprep.subr.mxu0 0.0
        %1091 = vmatpush1.msra.mxu0 %v877
        %1092 = vmatprep.subr.mxu0 0.0
        %1093 = vmatpush1.msra.mxu0 %v878
        %1094 = vmatprep.subr.mxu0 0.0
        %1095 = vmatpush1.msra.mxu0 %v879
        %1096 = vmatprep.subr.mxu0 0.0
        %1097 = vmatpush1.msra.mxu0 %v880
        %1098 = vmatprep.subr.mxu0 0.0
        %1099 = vmatpush1.msra.mxu0 %v881
        %1100 = vmatprep.subr.mxu0 0.0
        %1101 = vmatpush1.msra.mxu0 %v882
        %1102 = vmatprep.subr.mxu0 0.0
        %1103 = vmatpush1.msra.mxu0 %v883
        %1104 = vmatprep.subr.mxu0 0.0
        %1105 = vmatpush1.msra.mxu0 %v884
        %1106 = vmatprep.subr.mxu0 0.0
        %1107 = vmatpush1.msra.mxu0 %v885
        %1108 = vmatprep.subr.mxu0 0.0
        %1109 = vmatpush1.msra.mxu0 %v886
        %1110 = vmatprep.subr.mxu0 0.0
        %1111 = vmatpush1.msra.mxu0 %v887
        %1112 = vmatprep.subr.mxu0 0.0
        %1113 = vmatpush1.msra.mxu0 %v888
        %1114 = vmatprep.subr.mxu0 0.0
        %1115 = vmatpush1.msra.mxu0 %v889
        %1116 = vmatprep.subr.mxu0 0.0
        %1117 = vmatpush1.msra.mxu0 %v890
        %1118 = vmatprep.subr.mxu0 0.0
        %1119 = vmatpush1.msra.mxu0 %v891
        %1120 = vmatprep.subr.mxu0 0.0
        %1121 = vmatpush1.msra.mxu0 %v892
        %1122 = vmatprep.subr.mxu0 0.0
        %1123 = vmatpush1.msra.mxu0 %v893
        %1124 = vmatprep.subr.mxu0 0.0
        %1125 = vmatpush1.msra.mxu0 %v894
        %1126 = vmatprep.subr.mxu0 0.0
        %1127 = vmatpush1.msra.mxu0 %v895
        %1128 = vmatprep.subr.mxu0 0.0
        %1129 = vmatpush1.msra.mxu0 %v896
        %1130 = vmatprep.subr.mxu0 0.0
        %1131 = vmatpush1.msra.mxu0 %v897
        %1132 = vmatprep.subr.mxu0 0.0
        %1133 = vmatpush1.msra.mxu0 %v898
        %1134 = vmatprep.subr.mxu0 0.0
        %1135 = vmatpush1.msra.mxu0 %v899
        %1136 = vmatprep.subr.mxu0 0.0
        %1137 = vmatpush1.msra.mxu0 %v900
        %1138 = vmatprep.subr.mxu0 0.0
        %1139 = vmatpush1.msra.mxu0 %v901
        %1140 = vmatprep.subr.mxu0 0.0
        %1141 = vmatpush1.msra.mxu0 %v902
        %1142 = vmatprep.subr.mxu0 0.0
        %1143 = vmatpush1.msra.mxu0 %v903
        %1144 = vmatprep.subr.mxu0 0.0
        %1145 = vmatpush1.msra.mxu0 %v904
        %1146 = vmatprep.subr.mxu0 0.0
        %1147 = vmatpush1.msra.mxu0 %v905
        %1148 = vmatprep.subr.mxu0 0.0
        %1149 = vmatpush1.msra.mxu0 %v906
        %1150 = vmatprep.mubr.f32.mxu0 %v803
        %1151 = vmatmul.mubr.f32.gmra.mrb[0].mxu0 %v802
        %v1152 = vpop.f32.mrb[0].mxu0
        %v1153 = vadd.f32 %v1083, %v1152
        %v1154 = vpop.f32.mrb[0].mxu0
        %1155 = vdwg.mxu0
        %1156 = vmatprep.subr.mxu0 0.0
        %1157 = vmatpush1.msra.mxu0 %v907
        %1158 = vmatprep.subr.mxu0 0.0
        %1159 = vmatpush1.msra.mxu0 %v908
        %1160 = vmatprep.subr.mxu0 0.0
        %1161 = vmatpush1.msra.mxu0 %v909
        %1162 = vmatprep.subr.mxu0 0.0
        %1163 = vmatpush1.msra.mxu0 %v910
        %1164 = vmatprep.subr.mxu0 0.0
        %1165 = vmatpush1.msra.mxu0 %v911
        %1166 = vmatprep.subr.mxu0 0.0
        %1167 = vmatpush1.msra.mxu0 %v912
        %1168 = vmatprep.subr.mxu0 0.0
        %1169 = vmatpush1.msra.mxu0 %v913
        %1170 = vmatprep.subr.mxu0 0.0
        %1171 = vmatpush1.msra.mxu0 %v914
        %1172 = vmatprep.subr.mxu0 0.0
        %1173 = vmatpush1.msra.mxu0 %v915
        %1174 = vmatprep.subr.mxu0 0.0
        %1175 = vmatpush1.msra.mxu0 %v916
        %1176 = vmatprep.subr.mxu0 0.0
        %1177 = vmatpush1.msra.mxu0 %v917
        %1178 = vmatprep.subr.mxu0 0.0
        %1179 = vmatpush1.msra.mxu0 %v918
        %1180 = vmatprep.subr.mxu0 0.0
        %1181 = vmatpush1.msra.mxu0 %v919
        %1182 = vmatprep.subr.mxu0 0.0
        %1183 = vmatpush1.msra.mxu0 %v920
        %1184 = vmatprep.subr.mxu0 0.0
        %1185 = vmatpush1.msra.mxu0 %v921
        %1186 = vmatprep.subr.mxu0 0.0
        %1187 = vmatpush1.msra.mxu0 %v922
        %1188 = vmatprep.subr.mxu0 0.0
        %1189 = vmatpush1.msra.mxu0 %v923
        %1190 = vmatprep.subr.mxu0 0.0
        %1191 = vmatpush1.msra.mxu0 %v924
        %1192 = vmatprep.subr.mxu0 0.0
        %1193 = vmatpush1.msra.mxu0 %v925
        %1194 = vmatprep.subr.mxu0 0.0
        %1195 = vmatpush1.msra.mxu0 %v926
        %1196 = vmatprep.subr.mxu0 0.0
        %1197 = vmatpush1.msra.mxu0 %v927
        %1198 = vmatprep.subr.mxu0 0.0
        %1199 = vmatpush1.msra.mxu0 %v928
        %1200 = vmatprep.subr.mxu0 0.0
        %1201 = vmatpush1.msra.mxu0 %v929
        %1202 = vmatprep.subr.mxu0 0.0
        %1203 = vmatpush1.msra.mxu0 %v930
        %1204 = vmatprep.subr.mxu0 0.0
        %1205 = vmatpush1.msra.mxu0 %v931
        %1206 = vmatprep.subr.mxu0 0.0
        %1207 = vmatpush1.msra.mxu0 %v932
        %1208 = vmatprep.subr.mxu0 0.0
        %1209 = vmatpush1.msra.mxu0 %v933
        %1210 = vmatprep.subr.mxu0 0.0
        %1211 = vmatpush1.msra.mxu0 %v934
        %1212 = vmatprep.subr.mxu0 0.0
        %1213 = vmatpush1.msra.mxu0 %v935
        %1214 = vmatprep.subr.mxu0 0.0
        %1215 = vmatpush1.msra.mxu0 %v936
        %1216 = vmatprep.subr.mxu0 0.0
        %1217 = vmatpush1.msra.mxu0 %v937
        %1218 = vmatprep.subr.mxu0 0.0
        %1219 = vmatpush1.msra.mxu0 %v938
        %1220 = vmatprep.mubr.f32.mxu0 %v805
        %1221 = vmatmul.mubr.f32.gmra.mrb[0].mxu0 %v804
        %v1222 = vpop.f32.mrb[0].mxu0
        %v1223 = vadd.f32 %v1153, %v1222
        %v1224 = vpop.f32.mrb[0].mxu0
        %1225 = vdwg.mxu0
        %v1226 = vmax.f32 %v1223, 0.0
        %v1227 = vld [vmem:[#allocation7] sm:$0xff]
        %v1228 = vld [vmem:[#allocation7 + $0x8] sm:$0xff]
        %v1229 = vld [vmem:[#allocation7 + $0x10] sm:$0xff]
        %v1230 = vld [vmem:[#allocation7 + $0x18] sm:$0xff]
        %v1231 = vld [vmem:[#allocation7 + $0x20] sm:$0xff]
        %v1232 = vld [vmem:[#allocation7 + $0x28] sm:$0xff]
        %v1233 = vld [vmem:[#allocation7 + $0x30] sm:$0xff]
        %v1234 = vld [vmem:[#allocation7 + $0x38] sm:$0xff]
        %v1235 = vld [vmem:[#allocation7 + $0x40] sm:$0xff]
        %v1236 = vld [vmem:[#allocation7 + $0x48] sm:$0xff]
        %v1237 = vld [vmem:[#allocation7 + $0x50] sm:$0xff]
        %v1238 = vld [vmem:[#allocation7 + $0x58] sm:$0xff]
        %v1239 = vld [vmem:[#allocation7 + $0x60] sm:$0xff]
        %v1240 = vld [vmem:[#allocation7 + $0x68] sm:$0xff]
        %v1241 = vld [vmem:[#allocation7 + $0x70] sm:$0xff]
        %v1242 = vld [vmem:[#allocation7 + $0x78] sm:$0xff]
        %v1243 = vld [vmem:[%s4] sm:$0x1]
        %v1245 = vlaneseq
        %v1246 = vshrl.u32 %v1245, 7
        %v1247 = vsub.s32 0, %v1246
        %v1248 = vrot.slane %v1243, %v1247
        %1250 = vmatprep.subr.mxu0 0.0
        %1251 = vmatpush1.msra.mxu0 %v1227
        %1252 = vmatprep.subr.mxu0 0.0
        %1253 = vmatpush1.msra.mxu0 %v1228
        %1254 = vmatprep.subr.mxu0 0.0
        %1255 = vmatpush1.msra.mxu0 %v1229
        %1256 = vmatprep.subr.mxu0 0.0
        %1257 = vmatpush1.msra.mxu0 %v1230
        %1258 = vmatprep.subr.mxu0 0.0
        %1259 = vmatpush1.msra.mxu0 %v1231
        %1260 = vmatprep.subr.mxu0 0.0
        %1261 = vmatpush1.msra.mxu0 %v1232
        %1262 = vmatprep.subr.mxu0 0.0
        %1263 = vmatpush1.msra.mxu0 %v1233
        %1264 = vmatprep.subr.mxu0 0.0
        %1265 = vmatpush1.msra.mxu0 %v1234
        %1266 = vmatprep.subr.mxu0 0.0
        %1267 = vmatpush1.msra.mxu0 %v1235
        %1268 = vmatprep.subr.mxu0 0.0
        %1269 = vmatpush1.msra.mxu0 %v1236
        %1270 = vmatprep.subr.mxu0 0.0
        %1271 = vmatpush1.msra.mxu0 %v1237
        %1272 = vmatprep.subr.mxu0 0.0
        %1273 = vmatpush1.msra.mxu0 %v1238
        %1274 = vmatprep.subr.mxu0 0.0
        %1275 = vmatpush1.msra.mxu0 %v1239
        %1276 = vmatprep.subr.mxu0 0.0
        %1277 = vmatpush1.msra.mxu0 %v1240
        %1278 = vmatprep.subr.mxu0 0.0
        %1279 = vmatpush1.msra.mxu0 %v1241
        %1280 = vmatprep.subr.mxu0 0.0
        %1281 = vmatpush1.msra.mxu0 %v1242
        %1282 = vmatprep.subr.mxu0 0.0
        %1283 = vmatpush1.msra.mxu0 0.0
        %1284 = vmatprep.subr.mxu0 0.0
        %1285 = vmatpush1.msra.mxu0 0.0
        %1286 = vmatprep.subr.mxu0 0.0
        %1287 = vmatpush1.msra.mxu0 0.0
        %1288 = vmatprep.subr.mxu0 0.0
        %1289 = vmatpush1.msra.mxu0 0.0
        %1290 = vmatprep.subr.mxu0 0.0
        %1291 = vmatpush1.msra.mxu0 0.0
        %1292 = vmatprep.subr.mxu0 0.0
        %1293 = vmatpush1.msra.mxu0 0.0
        %1294 = vmatprep.subr.mxu0 0.0
        %1295 = vmatpush1.msra.mxu0 0.0
        %1296 = vmatprep.subr.mxu0 0.0
        %1297 = vmatpush1.msra.mxu0 0.0
        %1298 = vmatprep.subr.mxu0 0.0
        %1299 = vmatpush1.msra.mxu0 0.0
        %1300 = vmatprep.subr.mxu0 0.0
        %1301 = vmatpush1.msra.mxu0 0.0
        %1302 = vmatprep.subr.mxu0 0.0
        %1303 = vmatpush1.msra.mxu0 0.0
        %1304 = vmatprep.subr.mxu0 0.0
        %1305 = vmatpush1.msra.mxu0 0.0
        %1306 = vmatprep.subr.mxu0 0.0
        %1307 = vmatpush1.msra.mxu0 0.0
        %1308 = vmatprep.subr.mxu0 0.0
        %1309 = vmatpush1.msra.mxu0 0.0
        %1310 = vmatprep.subr.mxu0 0.0
        %1311 = vmatpush1.msra.mxu0 0.0
        %1312 = vmatprep.subr.mxu0 0.0
        %1313 = vmatpush1.msra.mxu0 0.0
        %1314 = vmatprep.mubr.f32.mxu0 0.0
        %1315 = vmatmul.mubr.f32.gmra.mrb[0].mxu0 %v1226
        %v1316 = vpop.f32.mrb[0].mxu0
        %v1317 = vadd.f32 %v1248, %v1316
        %v1318 = vpop.f32.mrb[0].mxu0
        %1319 = vdwg.mxu0
        %v1320 = vmul.f32 %v1317, %v810
        %v1321 = vrot.slane %v1320, 4
        %v1322 = vadd.f32 %v1320, %v1321
        %v1323 = vrot.slane %v1322, 2
        %v1324 = vadd.f32 %v1322, %v1323
        %v1325 = vrot.slane %v1324, 1
        %v1326 = vadd.f32 %v1324, %v1325
        %v1327 = vmul.f32 %v1326, 0.5
        %v1328 = vsub.f32 %v1317, %v1327
        %v1329 = vmul.f32 %v1328, %v1328
        %v1330 = vmul.f32 %v1329, %v810
        %v1331 = vrot.slane %v1330, 4
        %v1332 = vadd.f32 %v1330, %v1331
        %v1333 = vrot.slane %v1332, 2
        %v1334 = vadd.f32 %v1332, %v1333
        %v1335 = vrot.slane %v1334, 1
        %v1336 = vadd.f32 %v1334, %v1335
        %v1337 = vmul.f32 %v1336, 0.5
        %v1338 = vadd.f32 %v1337, 1e-05
        %v1339 = vrsqrt.pop %v1338
        %v1340 = vmul.f32 %v1328, %v1339
        %v1341 = vld [vmem:[%s5] sm:$0x1]
        %v1343 = vlaneseq
        %v1344 = vshrl.u32 %v1343, 7
        %v1345 = vsub.s32 0, %v1344
        %v1346 = vrot.slane %v1341, %v1345
        %v1348 = vmul.f32 %v1340, %v1346
        %v1349 = vld [vmem:[%s6] sm:$0x1]
        %v1351 = vlaneseq
        %v1352 = vshrl.u32 %v1351, 7
        %v1353 = vsub.s32 0, %v1352
        %v1354 = vrot.slane %v1349, %v1353
        %v1356 = vadd.f32 %v1348, %v1354
        %v1357 = vmax.f32 %v1356, 0.0
        %v1358 = vld [vmem:[#allocation8] sm:$0xff]
        %v1359 = vld [vmem:[#allocation8 + $0x8] sm:$0xff]
        %v1360 = vld [vmem:[#allocation8 + $0x10] sm:$0xff]
        %v1361 = vld [vmem:[#allocation8 + $0x18] sm:$0xff]
        %v1362 = vld [vmem:[#allocation8 + $0x20] sm:$0xff]
        %v1363 = vld [vmem:[#allocation8 + $0x28] sm:$0xff]
        %v1364 = vld [vmem:[#allocation8 + $0x30] sm:$0xff]
        %v1365 = vld [vmem:[#allocation8 + $0x38] sm:$0xff]
        %v1366 = vld [vmem:[#allocation8 + $0x40] sm:$0xff]
        %v1367 = vld [vmem:[#allocation8 + $0x48] sm:$0xff]
        %v1368 = vld [vmem:[#allocation8 + $0x50] sm:$0xff]
        %v1369 = vld [vmem:[#allocation8 + $0x58] sm:$0xff]
        %v1370 = vld [vmem:[#allocation8 + $0x60] sm:$0xff]
        %v1371 = vld [vmem:[#allocation8 + $0x68] sm:$0xff]
        %v1372 = vld [vmem:[#allocation8 + $0x70] sm:$0xff]
        %v1373 = vld [vmem:[#allocation8 + $0x78] sm:$0xff]
        %v1374 = vld [vmem:[%s8] sm:$0x1]
        %v1376 = vlaneseq
        %v1377 = vshrl.u32 %v1376, 7
        %v1378 = vsub.s32 0, %v1377
        %v1379 = vrot.slane %v1374, %v1378
        %1381 = vmatprep.subr.mxu0 0.0
        %1382 = vmatpush1.msra.mxu0 %v1358
        %1383 = vmatprep.subr.mxu0 0.0
        %1384 = vmatpush1.msra.mxu0 %v1359
        %1385 = vmatprep.subr.mxu0 0.0
        %1386 = vmatpush1.msra.mxu0 %v1360
        %1387 = vmatprep.subr.mxu0 0.0
        %1388 = vmatpush1.msra.mxu0 %v1361
        %1389 = vmatprep.subr.mxu0 0.0
        %1390 = vmatpush1.msra.mxu0 %v1362
        %1391 = vmatprep.subr.mxu0 0.0
        %1392 = vmatpush1.msra.mxu0 %v1363
        %1393 = vmatprep.subr.mxu0 0.0
        %1394 = vmatpush1.msra.mxu0 %v1364
        %1395 = vmatprep.subr.mxu0 0.0
        %1396 = vmatpush1.msra.mxu0 %v1365
        %1397 = vmatprep.subr.mxu0 0.0
        %1398 = vmatpush1.msra.mxu0 %v1366
        %1399 = vmatprep.subr.mxu0 0.0
        %1400 = vmatpush1.msra.mxu0 %v1367
        %1401 = vmatprep.subr.mxu0 0.0
        %1402 = vmatpush1.msra.mxu0 %v1368
        %1403 = vmatprep.subr.mxu0 0.0
        %1404 = vmatpush1.msra.mxu0 %v1369
        %1405 = vmatprep.subr.mxu0 0.0
        %1406 = vmatpush1.msra.mxu0 %v1370
        %1407 = vmatprep.subr.mxu0 0.0
        %1408 = vmatpush1.msra.mxu0 %v1371
        %1409 = vmatprep.subr.mxu0 0.0
        %1410 = vmatpush1.msra.mxu0 %v1372
        %1411 = vmatprep.subr.mxu0 0.0
        %1412 = vmatpush1.msra.mxu0 %v1373
        %1413 = vmatprep.subr.mxu0 0.0
        %1414 = vmatpush1.msra.mxu0 0.0
        %1415 = vmatprep.subr.mxu0 0.0
        %1416 = vmatpush1.msra.mxu0 0.0
        %1417 = vmatprep.subr.mxu0 0.0
        %1418 = vmatpush1.msra.mxu0 0.0
        %1419 = vmatprep.subr.mxu0 0.0
        %1420 = vmatpush1.msra.mxu0 0.0
        %1421 = vmatprep.subr.mxu0 0.0
        %1422 = vmatpush1.msra.mxu0 0.0
        %1423 = vmatprep.subr.mxu0 0.0
        %1424 = vmatpush1.msra.mxu0 0.0
        %1425 = vmatprep.subr.mxu0 0.0
        %1426 = vmatpush1.msra.mxu0 0.0
        %1427 = vmatprep.subr.mxu0 0.0
        %1428 = vmatpush1.msra.mxu0 0.0
        %1429 = vmatprep.subr.mxu0 0.0
        %1430 = vmatpush1.msra.mxu0 0.0
        %1431 = vmatprep.subr.mxu0 0.0
        %1432 = vmatpush1.msra.mxu0 0.0
        %1433 = vmatprep.subr.mxu0 0.0
        %1434 = vmatpush1.msra.mxu0 0.0
        %1435 = vmatprep.subr.mxu0 0.0
        %1436 = vmatpush1.msra.mxu0 0.0
        %1437 = vmatprep.subr.mxu0 0.0
        %1438 = vmatpush1.msra.mxu0 0.0
        %1439 = vmatprep.subr.mxu0 0.0
        %1440 = vmatpush1.msra.mxu0 0.0
        %1441 = vmatprep.subr.mxu0 0.0
        %1442 = vmatpush1.msra.mxu0 0.0
        %1443 = vmatprep.subr.mxu0 0.0
        %1444 = vmatpush1.msra.mxu0 0.0
        %1445 = vmatprep.mubr.f32.mxu0 0.0
        %1446 = vmatmul.mubr.f32.gmra.mrb[0].mxu0 %v1357
        %v1447 = vpop.f32.mrb[0].mxu0
        %v1448 = vadd.f32 %v1379, %v1447
        %v1449 = vpop.f32.mrb[0].mxu0
        %1450 = vdwg.mxu0
        %v1451 = vmul.f32 %v1448, %v810
        %v1452 = vrot.slane %v1451, 4
        %v1453 = vadd.f32 %v1451, %v1452
        %v1454 = vrot.slane %v1453, 2
        %v1455 = vadd.f32 %v1453, %v1454
        %v1456 = vrot.slane %v1455, 1
        %v1457 = vadd.f32 %v1455, %v1456
        %v1458 = vmul.f32 %v1457, 0.5
        %v1459 = vsub.f32 %v1448, %v1458
        %v1460 = vmul.f32 %v1459, %v1459
        %v1461 = vmul.f32 %v1460, %v810
        %v1462 = vrot.slane %v1461, 4
        %v1463 = vadd.f32 %v1461, %v1462
        %v1464 = vrot.slane %v1463, 2
        %v1465 = vadd.f32 %v1463, %v1464
        %v1466 = vrot.slane %v1465, 1
        %v1467 = vadd.f32 %v1465, %v1466
        %v1468 = vmul.f32 %v1467, 0.5
        %v1469 = vadd.f32 %v1468, 1e-05
        %v1470 = vrsqrt.pop %v1469
        %v1471 = vmul.f32 %v1459, %v1470
        %v1472 = vld [vmem:[%s9] sm:$0x1]
        %v1474 = vlaneseq
        %v1475 = vshrl.u32 %v1474, 7
        %v1476 = vsub.s32 0, %v1475
        %v1477 = vrot.slane %v1472, %v1476
        %v1479 = vmul.f32 %v1471, %v1477
        %v1480 = vld [vmem:[%s10] sm:$0x1]
        %v1482 = vlaneseq
        %v1483 = vshrl.u32 %v1482, 7
        %v1484 = vsub.s32 0, %v1483
        %v1485 = vrot.slane %v1480, %v1484
        %v1487 = vadd.f32 %v1479, %v1485
        %v1488 = vmax.f32 %v1487, 0.0
        %v1489 = vld [vmem:[#allocation10] sm:$0xff]
        %v1490 = vld [vmem:[#allocation10 + $0x8] sm:$0xff]
        %v1491 = vld [vmem:[#allocation10 + $0x10] sm:$0xff]
        %v1492 = vld [vmem:[#allocation10 + $0x18] sm:$0xff]
        %v1493 = vld [vmem:[#allocation10 + $0x20] sm:$0xff]
        %v1494 = vld [vmem:[#allocation10 + $0x28] sm:$0xff]
        %v1495 = vld [vmem:[#allocation10 + $0x30] sm:$0xff]
        %v1496 = vld [vmem:[#allocation10 + $0x38] sm:$0xff]
        %v1497 = vld [vmem:[#allocation10 + $0x40] sm:$0xff]
        %v1498 = vld [vmem:[#allocation10 + $0x48] sm:$0xff]
        %v1499 = vld [vmem:[#allocation10 + $0x50] sm:$0xff]
        %v1500 = vld [vmem:[#allocation10 + $0x58] sm:$0xff]
        %v1501 = vld [vmem:[#allocation10 + $0x60] sm:$0xff]
        %v1502 = vld [vmem:[#allocation10 + $0x68] sm:$0xff]
        %v1503 = vld [vmem:[#allocation10 + $0x70] sm:$0xff]
        %v1504 = vld [vmem:[#allocation10 + $0x78] sm:$0xff]
        %v1505 = vld [vmem:[%s12] sm:$0x1]
        %v1507 = vlaneseq
        %v1508 = vshrl.u32 %v1507, 7
        %v1509 = vsub.s32 0, %v1508
        %v1510 = vrot.slane %v1505, %v1509
        %1512 = vmatprep.subr.mxu0 0.0
        %1513 = vmatpush1.msra.mxu0 %v1489
        %1514 = vmatprep.subr.mxu0 0.0
        %1515 = vmatpush1.msra.mxu0 %v1490
        %1516 = vmatprep.subr.mxu0 0.0
        %1517 = vmatpush1.msra.mxu0 %v1491
        %1518 = vmatprep.subr.mxu0 0.0
        %1519 = vmatpush1.msra.mxu0 %v1492
        %1520 = vmatprep.subr.mxu0 0.0
        %1521 = vmatpush1.msra.mxu0 %v1493
        %1522 = vmatprep.subr.mxu0 0.0
        %1523 = vmatpush1.msra.mxu0 %v1494
        %1524 = vmatprep.subr.mxu0 0.0
        %1525 = vmatpush1.msra.mxu0 %v1495
        %1526 = vmatprep.subr.mxu0 0.0
        %1527 = vmatpush1.msra.mxu0 %v1496
        %1528 = vmatprep.subr.mxu0 0.0
        %1529 = vmatpush1.msra.mxu0 %v1497
        %1530 = vmatprep.subr.mxu0 0.0
        %1531 = vmatpush1.msra.mxu0 %v1498
        %1532 = vmatprep.subr.mxu0 0.0
        %1533 = vmatpush1.msra.mxu0 %v1499
        %1534 = vmatprep.subr.mxu0 0.0
        %1535 = vmatpush1.msra.mxu0 %v1500
        %1536 = vmatprep.subr.mxu0 0.0
        %1537 = vmatpush1.msra.mxu0 %v1501
        %1538 = vmatprep.subr.mxu0 0.0
        %1539 = vmatpush1.msra.mxu0 %v1502
        %1540 = vmatprep.subr.mxu0 0.0
        %1541 = vmatpush1.msra.mxu0 %v1503
        %1542 = vmatprep.subr.mxu0 0.0
        %1543 = vmatpush1.msra.mxu0 %v1504
        %1544 = vmatprep.subr.mxu0 0.0
        %1545 = vmatpush1.msra.mxu0 0.0
        %1546 = vmatprep.subr.mxu0 0.0
        %1547 = vmatpush1.msra.mxu0 0.0
        %1548 = vmatprep.subr.mxu0 0.0
        %1549 = vmatpush1.msra.mxu0 0.0
        %1550 = vmatprep.subr.mxu0 0.0
        %1551 = vmatpush1.msra.mxu0 0.0
        %1552 = vmatprep.subr.mxu0 0.0
        %1553 = vmatpush1.msra.mxu0 0.0
        %1554 = vmatprep.subr.mxu0 0.0
        %1555 = vmatpush1.msra.mxu0 0.0
        %1556 = vmatprep.subr.mxu0 0.0
        %1557 = vmatpush1.msra.mxu0 0.0
        %1558 = vmatprep.subr.mxu0 0.0
        %1559 = vmatpush1.msra.mxu0 0.0
        %1560 = vmatprep.subr.mxu0 0.0
        %1561 = vmatpush1.msra.mxu0 0.0
        %1562 = vmatprep.subr.mxu0 0.0
        %1563 = vmatpush1.msra.mxu0 0.0
        %1564 = vmatprep.subr.mxu0 0.0
        %1565 = vmatpush1.msra.mxu0 0.0
        %1566 = vmatprep.subr.mxu0 0.0
        %1567 = vmatpush1.msra.mxu0 0.0
        %1568 = vmatprep.subr.mxu0 0.0
        %1569 = vmatpush1.msra.mxu0 0.0
        %1570 = vmatprep.subr.mxu0 0.0
        %1571 = vmatpush1.msra.mxu0 0.0
        %1572 = vmatprep.subr.mxu0 0.0
        %1573 = vmatpush1.msra.mxu0 0.0
        %1574 = vmatprep.subr.mxu0 0.0
        %1575 = vmatpush1.msra.mxu0 0.0
        %1576 = vmatprep.mubr.f32.mxu0 0.0
        %1577 = vmatmul.mubr.f32.gmra.mrb[0].mxu0 %v1488
        %v1578 = vpop.f32.mrb[0].mxu0
        %v1579 = vadd.f32 %v1510, %v1578
        %v1580 = vpop.f32.mrb[0].mxu0
        %1581 = vdwg.mxu0
        %v1582 = vmul.f32 %v1579, %v810
        %v1583 = vrot.slane %v1582, 4
        %v1584 = vadd.f32 %v1582, %v1583
        %v1585 = vrot.slane %v1584, 2
        %v1586 = vadd.f32 %v1584, %v1585
        %v1587 = vrot.slane %v1586, 1
        %v1588 = vadd.f32 %v1586, %v1587
        %v1589 = vmul.f32 %v1588, 0.5
        %v1590 = vsub.f32 %v1579, %v1589
        %v1591 = vmul.f32 %v1590, %v1590
        %v1592 = vmul.f32 %v1591, %v810
        %v1593 = vrot.slane %v1592, 4
        %v1594 = vadd.f32 %v1592, %v1593
        %v1595 = vrot.slane %v1594, 2
        %v1596 = vadd.f32 %v1594, %v1595
        %v1597 = vrot.slane %v1596, 1
        %v1598 = vadd.f32 %v1596, %v1597
        %v1599 = vmul.f32 %v1598, 0.5
        %v1600 = vadd.f32 %v1599, 1e-05
        %v1601 = vrsqrt.pop %v1600
        %v1602 = vmul.f32 %v1590, %v1601
        %v1603 = vld [vmem:[%s13] sm:$0x1]
        %v1605 = vlaneseq
        %v1606 = vshrl.u32 %v1605, 7
        %v1607 = vsub.s32 0, %v1606
        %v1608 = vrot.slane %v1603, %v1607
        %v1610 = vmul.f32 %v1602, %v1608
        %v1611 = vld [vmem:[%s14] sm:$0x1]
        %v1613 = vlaneseq
        %v1614 = vshrl.u32 %v1613, 7
        %v1615 = vsub.s32 0, %v1614
        %v1616 = vrot.slane %v1611, %v1615
        %v1618 = vadd.f32 %v1610, %v1616
        %v1619 = vld [vmem:[#allocation11] sm:$0xff]
        %v1620 = vld [vmem:[#allocation11 + $0x8] sm:$0xff]
        %v1621 = vld [vmem:[#allocation11 + $0x10] sm:$0xff]
        %v1622 = vld [vmem:[#allocation11 + $0x18] sm:$0xff]
        %v1623 = vld [vmem:[#allocation11 + $0x20] sm:$0xff]
        %v1624 = vld [vmem:[#allocation11 + $0x28] sm:$0xff]
        %v1625 = vld [vmem:[#allocation11 + $0x30] sm:$0xff]
        %v1626 = vld [vmem:[#allocation11 + $0x38] sm:$0xff]
        %v1627 = vld [vmem:[#allocation11 + $0x40] sm:$0xff]
        %v1628 = vld [vmem:[#allocation11 + $0x48] sm:$0xff]
        %v1629 = vld [vmem:[#allocation11 + $0x50] sm:$0xff]
        %v1630 = vld [vmem:[#allocation11 + $0x58] sm:$0xff]
        %v1631 = vld [vmem:[#allocation11 + $0x60] sm:$0xff]
        %v1632 = vld [vmem:[#allocation11 + $0x68] sm:$0xff]
        %v1633 = vld [vmem:[#allocation11 + $0x70] sm:$0xff]
        %v1634 = vld [vmem:[#allocation11 + $0x78] sm:$0xff]
        %v1635 = vld [vmem:[%s16] sm:$0x1]
        %v1637 = vlaneseq
        %v1638 = vshrl.u32 %v1637, 7
        %v1639 = vsub.s32 0, %v1638
        %v1640 = vrot.slane %v1635, %v1639
        %1642 = vmatprep.subr.mxu0 0.0
        %1643 = vmatpush1.msra.mxu0 %v1619
        %1644 = vmatprep.subr.mxu0 0.0
        %1645 = vmatpush1.msra.mxu0 %v1620
        %1646 = vmatprep.subr.mxu0 0.0
        %1647 = vmatpush1.msra.mxu0 %v1621
        %1648 = vmatprep.subr.mxu0 0.0
        %1649 = vmatpush1.msra.mxu0 %v1622
        %1650 = vmatprep.subr.mxu0 0.0
        %1651 = vmatpush1.msra.mxu0 %v1623
        %1652 = vmatprep.subr.mxu0 0.0
        %1653 = vmatpush1.msra.mxu0 %v1624
        %1654 = vmatprep.subr.mxu0 0.0
        %1655 = vmatpush1.msra.mxu0 %v1625
        %1656 = vmatprep.subr.mxu0 0.0
        %1657 = vmatpush1.msra.mxu0 %v1626
        %1658 = vmatprep.subr.mxu0 0.0
        %1659 = vmatpush1.msra.mxu0 %v1627
        %1660 = vmatprep.subr.mxu0 0.0
        %1661 = vmatpush1.msra.mxu0 %v1628
        %1662 = vmatprep.subr.mxu0 0.0
        %1663 = vmatpush1.msra.mxu0 %v1629
        %1664 = vmatprep.subr.mxu0 0.0
        %1665 = vmatpush1.msra.mxu0 %v1630
        %1666 = vmatprep.subr.mxu0 0.0
        %1667 = vmatpush1.msra.mxu0 %v1631
        %1668 = vmatprep.subr.mxu0 0.0
        %1669 = vmatpush1.msra.mxu0 %v1632
        %1670 = vmatprep.subr.mxu0 0.0
        %1671 = vmatpush1.msra.mxu0 %v1633
        %1672 = vmatprep.subr.mxu0 0.0
        %1673 = vmatpush1.msra.mxu0 %v1634
        %1674 = vmatprep.subr.mxu0 0.0
        %1675 = vmatpush1.msra.mxu0 0.0
        %1676 = vmatprep.subr.mxu0 0.0
        %1677 = vmatpush1.msra.mxu0 0.0
        %1678 = vmatprep.subr.mxu0 0.0
        %1679 = vmatpush1.msra.mxu0 0.0
        %1680 = vmatprep.subr.mxu0 0.0
        %1681 = vmatpush1.msra.mxu0 0.0
        %1682 = vmatprep.subr.mxu0 0.0
        %1683 = vmatpush1.msra.mxu0 0.0
        %1684 = vmatprep.subr.mxu0 0.0
        %1685 = vmatpush1.msra.mxu0 0.0
        %1686 = vmatprep.subr.mxu0 0.0
        %1687 = vmatpush1.msra.mxu0 0.0
        %1688 = vmatprep.subr.mxu0 0.0
        %1689 = vmatpush1.msra.mxu0 0.0
        %1690 = vmatprep.subr.mxu0 0.0
        %1691 = vmatpush1.msra.mxu0 0.0
        %1692 = vmatprep.subr.mxu0 0.0
        %1693 = vmatpush1.msra.mxu0 0.0
        %1694 = vmatprep.subr.mxu0 0.0
        %1695 = vmatpush1.msra.mxu0 0.0
        %1696 = vmatprep.subr.mxu0 0.0
        %1697 = vmatpush1.msra.mxu0 0.0
        %1698 = vmatprep.subr.mxu0 0.0
        %1699 = vmatpush1.msra.mxu0 0.0
        %1700 = vmatprep.subr.mxu0 0.0
        %1701 = vmatpush1.msra.mxu0 0.0
        %1702 = vmatprep.subr.mxu0 0.0
        %1703 = vmatpush1.msra.mxu0 0.0
        %1704 = vmatprep.subr.mxu0 0.0
        %1705 = vmatpush1.msra.mxu0 0.0
        %1706 = vmatprep.mubr.f32.mxu0 0.0
        %1707 = vmatmul.mubr.f32.gmra.mrb[0].mxu0 %v1618
        %v1708 = vpop.f32.mrb[0].mxu0
        %v1709 = vadd.f32 %v1640, %v1708
        %v1710 = vpop.f32.mrb[0].mxu0
        %1711 = vdwg.mxu0
        %v1712 = vmul.f32 %v1709, %v810
        %v1713 = vrot.slane %v1712, 4
        %v1714 = vadd.f32 %v1712, %v1713
        %v1715 = vrot.slane %v1714, 2
        %v1716 = vadd.f32 %v1714, %v1715
        %v1717 = vrot.slane %v1716, 1
        %v1718 = vadd.f32 %v1716, %v1717
        %v1719 = vmul.f32 %v1718, 0.5
        %v1720 = vsub.f32 %v1709, %v1719
        %v1721 = vmul.f32 %v1720, %v1720
        %v1722 = vmul.f32 %v1721, %v810
        %v1723 = vrot.slane %v1722, 4
        %v1724 = vadd.f32 %v1722, %v1723
        %v1725 = vrot.slane %v1724, 2
        %v1726 = vadd.f32 %v1724, %v1725
        %v1727 = vrot.slane %v1726, 1
        %v1728 = vadd.f32 %v1726, %v1727
        %v1729 = vmul.f32 %v1728, 0.5
        %v1730 = vadd.f32 %v1729, 1e-05
        %v1731 = vrsqrt.pop %v1730
        %v1732 = vmul.f32 %v1720, %v1731
        %v1733 = vld [vmem:[%s17] sm:$0x1]
        %v1735 = vlaneseq
        %v1736 = vshrl.u32 %v1735, 7
        %v1737 = vsub.s32 0, %v1736
        %v1738 = vrot.slane %v1733, %v1737
        %v1740 = vmul.f32 %v1732, %v1738
        %v1741 = vld [vmem:[%s18] sm:$0x1]
        %v1743 = vlaneseq
        %v1744 = vshrl.u32 %v1743, 7
        %v1745 = vsub.s32 0, %v1744
        %v1746 = vrot.slane %v1741, %v1745
        %v1748 = vadd.f32 %v1740, %v1746
        %v1749 = vmax.f32 %v1748, 0.0
        %v1750 = vld [vmem:[#allocation13] sm:$0xff]
        %v1751 = vld [vmem:[#allocation13 + $0x8] sm:$0xff]
        %v1752 = vld [vmem:[#allocation13 + $0x10] sm:$0xff]
        %v1753 = vld [vmem:[#allocation13 + $0x18] sm:$0xff]
        %v1754 = vld [vmem:[#allocation13 + $0x20] sm:$0xff]
        %v1755 = vld [vmem:[#allocation13 + $0x28] sm:$0xff]
        %v1756 = vld [vmem:[#allocation13 + $0x30] sm:$0xff]
        %v1757 = vld [vmem:[#allocation13 + $0x38] sm:$0xff]
        %v1758 = vld [vmem:[#allocation13 + $0x40] sm:$0xff]
        %v1759 = vld [vmem:[#allocation13 + $0x48] sm:$0xff]
        %v1760 = vld [vmem:[#allocation13 + $0x50] sm:$0xff]
        %v1761 = vld [vmem:[#allocation13 + $0x58] sm:$0xff]
        %v1762 = vld [vmem:[#allocation13 + $0x60] sm:$0xff]
        %v1763 = vld [vmem:[#allocation13 + $0x68] sm:$0xff]
        %v1764 = vld [vmem:[#allocation13 + $0x70] sm:$0xff]
        %v1765 = vld [vmem:[#allocation13 + $0x78] sm:$0xff]
        %v1766 = vld [vmem:[%s20] sm:$0x1]
        %v1768 = vlaneseq
        %v1769 = vshrl.u32 %v1768, 7
        %v1770 = vsub.s32 0, %v1769
        %v1771 = vrot.slane %v1766, %v1770
        %1773 = vmatprep.subr.mxu0 0.0
        %1774 = vmatpush1.msra.mxu0 %v1750
        %1775 = vmatprep.subr.mxu0 0.0
        %1776 = vmatpush1.msra.mxu0 %v1751
        %1777 = vmatprep.subr.mxu0 0.0
        %1778 = vmatpush1.msra.mxu0 %v1752
        %1779 = vmatprep.subr.mxu0 0.0
        %1780 = vmatpush1.msra.mxu0 %v1753
        %1781 = vmatprep.subr.mxu0 0.0
        %1782 = vmatpush1.msra.mxu0 %v1754
        %1783 = vmatprep.subr.mxu0 0.0
        %1784 = vmatpush1.msra.mxu0 %v1755
        %1785 = vmatprep.subr.mxu0 0.0
        %1786 = vmatpush1.msra.mxu0 %v1756
        %1787 = vmatprep.subr.mxu0 0.0
        %1788 = vmatpush1.msra.mxu0 %v1757
        %1789 = vmatprep.subr.mxu0 0.0
        %1790 = vmatpush1.msra.mxu0 %v1758
        %1791 = vmatprep.subr.mxu0 0.0
        %1792 = vmatpush1.msra.mxu0 %v1759
        %1793 = vmatprep.subr.mxu0 0.0
        %1794 = vmatpush1.msra.mxu0 %v1760
        %1795 = vmatprep.subr.mxu0 0.0
        %1796 = vmatpush1.msra.mxu0 %v1761
        %1797 = vmatprep.subr.mxu0 0.0
        %1798 = vmatpush1.msra.mxu0 %v1762
        %1799 = vmatprep.subr.mxu0 0.0
        %1800 = vmatpush1.msra.mxu0 %v1763
        %1801 = vmatprep.subr.mxu0 0.0
        %1802 = vmatpush1.msra.mxu0 %v1764
        %1803 = vmatprep.subr.mxu0 0.0
        %1804 = vmatpush1.msra.mxu0 %v1765
        %1805 = vmatprep.subr.mxu0 0.0
        %1806 = vmatpush1.msra.mxu0 0.0
        %1807 = vmatprep.subr.mxu0 0.0
        %1808 = vmatpush1.msra.mxu0 0.0
        %1809 = vmatprep.subr.mxu0 0.0
        %1810 = vmatpush1.msra.mxu0 0.0
        %1811 = vmatprep.subr.mxu0 0.0
        %1812 = vmatpush1.msra.mxu0 0.0
        %1813 = vmatprep.subr.mxu0 0.0
        %1814 = vmatpush1.msra.mxu0 0.0
        %1815 = vmatprep.subr.mxu0 0.0
        %1816 = vmatpush1.msra.mxu0 0.0
        %1817 = vmatprep.subr.mxu0 0.0
        %1818 = vmatpush1.msra.mxu0 0.0
        %1819 = vmatprep.subr.mxu0 0.0
        %1820 = vmatpush1.msra.mxu0 0.0
        %1821 = vmatprep.subr.mxu0 0.0
        %1822 = vmatpush1.msra.mxu0 0.0
        %1823 = vmatprep.subr.mxu0 0.0
        %1824 = vmatpush1.msra.mxu0 0.0
        %1825 = vmatprep.subr.mxu0 0.0
        %1826 = vmatpush1.msra.mxu0 0.0
        %1827 = vmatprep.subr.mxu0 0.0
        %1828 = vmatpush1.msra.mxu0 0.0
        %1829 = vmatprep.subr.mxu0 0.0
        %1830 = vmatpush1.msra.mxu0 0.0
        %1831 = vmatprep.subr.mxu0 0.0
        %1832 = vmatpush1.msra.mxu0 0.0
        %1833 = vmatprep.subr.mxu0 0.0
        %1834 = vmatpush1.msra.mxu0 0.0
        %1835 = vmatprep.subr.mxu0 0.0
        %1836 = vmatpush1.msra.mxu0 0.0
        %1837 = vmatprep.mubr.f32.mxu0 0.0
        %1838 = vmatmul.mubr.f32.gmra.mrb[0].mxu0 %v1749
        %v1839 = vpop.f32.mrb[0].mxu0
        %v1840 = vadd.f32 %v1771, %v1839
        %v1841 = vpop.f32.mrb[0].mxu0
        %1842 = vdwg.mxu0
        %1843 = vst [vmem:[%s790] sm:$0xff] %v1618
        %1844 = vst [vmem:[%s797] sm:$0xff] %v1840
        %s1845 = sand.u32 %s500, 1
        %s1846 = scalar_lea.sflag [#allocation4], %s1845
        %s1847 = sand.u32 %s500, 1
        %s1848 = smul.addr %s1847, 8
        %s1849 = scalar_lea.vmem [#allocation14], %s1848
        %s1850 = sand.u32 %s526, 1
        %s1851 = scalar_lea.sflag [#allocation16], %s1850
        %s1852 = sand.u32 %s526, 1
        %s1853 = smul.addr %s1852, 8
        %s1854 = scalar_lea.vmem [#allocation15], %s1853
        // Predicated region
        $region133: #{tpu_custom_call.1} parent=103 // pred_check
          %p1855 = pneg %p510
        $region134: #{tpu_custom_call.1} parent=103 // pred_check_branch
          %1857 = sbr.rel (%p1855) target = $region136
        $region135: #{tpu_custom_call.1} parent=103 // pred_region
          %s1859 = ssub.s32 128, 128
          %1860 = vsyncadd %s1846, %s1859
          %s1861 = smul.addr %s46, 128
          %s1862 = scalar_lea.hbm %s21, %s1861
          %s1864 = sshll.u32 %s1849, 4
          %s1865 = int_to_ptr.vmem [resolvable:$true] %s1864
          %1867 = dma.vmem_to_hbm [thread:$0]  %s1865, 128, %s1862, %s1846
        $region136: #{tpu_custom_call.1} parent=103 // pred_fallthru
          _
        // Predicated region
        $region137: #{tpu_custom_call.1} parent=103 // pred_check
          %p1868 = pneg %p536
        $region138: #{tpu_custom_call.1} parent=103 // pred_check_branch
          %1870 = sbr.rel (%p1868) target = $region140
        $region139: #{tpu_custom_call.1} parent=103 // pred_region
          %s1872 = ssub.s32 128, 128
          %1873 = vsyncadd %s1851, %s1872
          %s1874 = smul.addr %s46, 128
          %s1875 = scalar_lea.hbm %s22, %s1874
          %s1877 = sshll.u32 %s1854, 4
          %s1878 = int_to_ptr.vmem [resolvable:$true] %s1877
          %1880 = dma.vmem_to_hbm [thread:$0]  %s1878, 128, %s1875, %s1851
        $region140: #{tpu_custom_call.1} parent=103 // pred_fallthru
          _
      $region104: #{tpu_custom_call.1} parent=5 // pred_fallthru
        _
      %p1881 = scmp.le.s32.totalorder 2, %s41
      // Predicated region
      $region141: #{tpu_custom_call.1} parent=5 // pred_check
        %p1882 = pneg %p1881
      $region142: #{tpu_custom_call.1} parent=5 // pred_check_branch
        %1884 = sbr.rel (%p1882) target = $region144
      $region143: #{tpu_custom_call.1} parent=5 // pred_region
        %s1885 = ssub.s32 %s41, 2
        // Predicated region
        $region145: #{tpu_custom_call.1} parent=143 // pred_check
          %p1886 = pneg %p516
        $region146: #{tpu_custom_call.1} parent=143 // pred_check_branch
          %1888 = sbr.rel (%p1886) target = $region148
        $region147: #{tpu_custom_call.1} parent=143 // pred_region
          %s1889 = sand.u32 %s501, 1
          %s1890 = scalar_lea.sflag [#allocation4], %s1889
          %s1891 = sand.u32 %s501, 1
          %s1892 = smul.addr %s1891, 8
          %s1893 = scalar_lea.vmem [#allocation14], %s1892
          %1894 = dma.done %s1890, 128
        $region148: #{tpu_custom_call.1} parent=143 // pred_fallthru
          _
        // Predicated region
        $region149: #{tpu_custom_call.1} parent=143 // pred_check
          %p1895 = pneg %p542
        $region150: #{tpu_custom_call.1} parent=143 // pred_check_branch
          %1897 = sbr.rel (%p1895) target = $region152
        $region151: #{tpu_custom_call.1} parent=143 // pred_region
          %s1898 = sand.u32 %s527, 1
          %s1899 = scalar_lea.sflag [#allocation16], %s1898
          %s1900 = sand.u32 %s527, 1
          %s1901 = smul.addr %s1900, 8
          %s1902 = scalar_lea.vmem [#allocation15], %s1901
          %1903 = dma.done %s1899, 128
        $region152: #{tpu_custom_call.1} parent=143 // pred_fallthru
          _
      $region144: #{tpu_custom_call.1} parent=5 // pred_fallthru
        _
    $region6: #{tpu_custom_call.1} parent=1 // loop_footer
      %s45 = sadd.s32 1, %s41
    $region7: #{tpu_custom_call.1} parent=1 // loop_footer_branch
      %40 = sbr.rel target = $region3
    $region8: #{tpu_custom_call.1} parent=1 // loop_exit
      _
    %1904 = vsyncpa [#allocation3], 1
    %s1905 = scalar_lea.sflag [#allocation3], 1
    %1906 = vsyncpa %s1905, 1
    %1907 = vsyncpa [#allocation6], 1
    %1908 = vsyncpa [#allocation9], 1
    %1909 = vsyncpa [#allocation12], 1
    %1910 = vsyncpa [#allocation4], 1
    %s1911 = scalar_lea.sflag [#allocation4], 1
    %1912 = vsyncpa %s1911, 1
    %1913 = vsyncpa [#allocation16], 1
    %s1914 = scalar_lea.sflag [#allocation16], 1
    %1915 = vsyncpa %s1914, 1

</llo_original>
